<compile_context>
chip_gen: v7x
topology: tpu7x:2x2x1
jax: 0.10.0
libtpu: 0.0.40
codegen_flags: <defaults>
</compile_context>

<pallas_src>
import math
import heapq
import functools
from collections import deque

import numpy as np

import jax
import jax.numpy as jnp
from jax import lax
from jax.experimental import pallas as pl
from jax.experimental.pallas import tpu as pltpu


def _sigmoid(v):
    # numerically stable logistic (VPU/EUP)
    e = jnp.exp(-jnp.abs(v))
    return jnp.where(v >= 0, 1.0 / (1.0 + e), e / (1.0 + e))


# ----------------------------------------------------------------------------
# [K1] fused: in_proj + SiLU(z) + depthwise 3x3 conv + SiLU + packed SSM projections + edge weights
# ----------------------------------------------------------------------------
def _in_ssm_kernel(x_ref, win_ref, cw_ref, cb_ref, wpack_ref, dtb_ref, a_ref,
                   xz_ref, dabx_ref, cs_ref, ver_ref, hor_ref, pad_ref):
    H, W, dm = x_ref.shape
    de = cw_ref.shape[1]
    L = H * W

    # in_proj: one (L, dm) x (dm, 2*de) bf16 MXU matmul, f32 accumulation
    xi = x_ref[...].reshape(L, dm)
    proj = jnp.dot(xi.astype(jnp.bfloat16), win_ref[...],
                   preferred_element_type=jnp.float32)               # (L, 2*de)
    z = proj[:, de:]
    z_silu = z * _sigmoid(z)                                          # SiLU gate

    # depthwise 3x3 conv via zero-halo VMEM scratch; only the 1-wide border is zeroed
    # TODO(synk): pltpu.roll-based shifts + edge masks would avoid the halo scratch entirely.
    zrow = jnp.zeros((1, W + 2, de), jnp.float32)
    zcol = jnp.zeros((H + 2, 1, de), jnp.float32)
    pad_ref[0:1, :, :] = zrow
    pad_ref[H + 1:H + 2, :, :] = zrow
    pad_ref[:, 0:1, :] = zcol
    pad_ref[:, W + 1:W + 2, :] = zcol
    pad_ref[1:H + 1, 1:W + 1, :] = proj[:, :de].reshape(H, W, de)
    acc = jnp.zeros((H, W, de), jnp.float32)
    for u in range(3):
        for v in range(3):
            acc = acc + pad_ref[u:u + H, v:v + W, :] * cw_ref[3 * u + v, :].reshape(1, 1, de)
    acc = acc + cb_ref[...].reshape(1, 1, de)
    xf_hw = acc * _sigmoid(acc)                                       # SiLU
    xf = xf_hw.reshape(L, de)                                         # conv+SiLU features

    # exp(-cosine) 4-neighbour edge weights for the host MST (flat, 2-D ops only)
    def _cos_edge(a, b):
        eps = 1e-8
        na = jnp.maximum(jnp.sqrt(jnp.sum(a * a, axis=-1, keepdims=True)), eps)
        nb = jnp.maximum(jnp.sqrt(jnp.sum(b * b, axis=-1, keepdims=True)), eps)
        return jnp.exp(-(jnp.sum(a * b, axis=-1, keepdims=True) / (na * nb)))

    ver_ref[...] = _cos_edge(xf[:L - W, :], xf[W:, :])                # vertical edges, (L-W, 1)
    hor_ref[...] = _cos_edge(xf[:L - 1, :], xf[1:, :])                # horizontal edges, (L-1, 1)

    # packed [folded dt proj | w_B | w_C | 0] projection -> one (L, de) x (de, 128) bf16 matmul
    y = jnp.dot(xf.astype(jnp.bfloat16), wpack_ref[...],
                preferred_element_type=jnp.float32)                   # (L, 128)
    dts = y[:, :de]
    bs = y[:, de:de + 1]                                              # d_state == 1
    cvals = y[:, de + 1:de + 2]

    d = dts + dtb_ref[...]
    dsp = jnp.where(d > 20.0, d, jnp.log(1.0 + jnp.exp(jnp.minimum(d, 20.0))))   # softplus
    dA = jnp.exp(dsp * a_ref[...])                                    # deltaA (tree edge weights)
    BX = dsp * bs * xf                                                # deltaB * x (d_state == 1)

    xz_ref[...] = jnp.concatenate([xf, z_silu], axis=-1).astype(xz_ref.dtype)   # bf16 slab
    dabx_ref[...] = jnp.concatenate([dA, BX], axis=-1)                # f32 (scan precision)
    cs_ref[...] = cvals


def _in_ssm_call(x, p):
    B, H, W, dm = x.shape
    de2 = p["w_in"].shape[1]
    de = de2 // 2
    L = H * W
    pack = p["w_pack"].shape[1]
    # TODO(synk): tile over H rows (1-row halo) for large feature maps (VMEM on v7x).
    out_shape = (
        jax.ShapeDtypeStruct((B * L, de2), jnp.bfloat16),             # [xf | silu(z)]
        jax.ShapeDtypeStruct((B * L, de2), jnp.float32),              # [deltaA | BX]
        jax.ShapeDtypeStruct((B * L, 1), jnp.float32),                # C
        jax.ShapeDtypeStruct((B, L - W, 1), jnp.float32),             # vertical edge weights
        jax.ShapeDtypeStruct((B, L - 1, 1), jnp.float32),             # horizontal edge weights
    )
    out_specs = (
        pl.BlockSpec((L, de2), lambda b: (b, 0)),
        pl.BlockSpec((L, de2), lambda b: (b, 0)),
        pl.BlockSpec((L, 1), lambda b: (b, 0)),
        pl.BlockSpec((None, L - W, 1), lambda b: (b, 0, 0)),
        pl.BlockSpec((None, L - 1, 1), lambda b: (b, 0, 0)),
    )
    return pl.pallas_call(
        _in_ssm_kernel,
        grid=(B,),
        in_specs=[pl.BlockSpec((None, H, W, dm), lambda b: (b, 0, 0, 0)),
                  pl.BlockSpec((dm, de2), lambda b: (0, 0)),
                  pl.BlockSpec((9, de), lambda b: (0, 0)),
                  pl.BlockSpec((1, de), lambda b: (0, 0)),
                  pl.BlockSpec((de, pack), lambda b: (0, 0)),
                  pl.BlockSpec((1, de), lambda b: (0, 0)),
                  pl.BlockSpec((1, de), lambda b: (0, 0))],
        out_specs=out_specs,
        out_shape=out_shape,
        scratch_shapes=[pltpu.VMEM((H + 2, W + 2, de), jnp.float32)],
        compiler_params=pltpu.CompilerParams(dimension_semantics=("parallel",)),
    )(x.astype(jnp.float32), p["w_in"], p["conv_w"], p["conv_b"],
      p["w_pack"], p["dt_bias"], p["A"])


# ----------------------------------------------------------------------------
# [K3] level-synchronous tree-scan aggregation (BFS order):
#        leaf->root : up[p] += sum_{c child of p} w[c] * up[c]
#        root->leaf : out[c] = up[c] + w[c] * (out[par[c]] - w[c] * up[c])
#      Each BFS level is processed as one batched block; per-level parent/child selection is a
#      (P, P) 0/1 matrix built from iota comparisons and applied with a plain MXU matmul, so the
#      dependent chain is O(tree depth) instead of O(L).
# ----------------------------------------------------------------------------
def _tree_scan_kernel(nlev_ref, lstart_ref, dabx_ref, idx_ref, out_ref, *, LVL_PAD, LS_STRIDE):
    b = pl.program_id(0)
    Lp, D2 = dabx_ref.shape
    D = D2 // 2
    P = LVL_PAD
    base = b * LS_STRIDE
    nl = nlev_ref[b]                                   # number of BFS levels for this batch

    # working buffer (doubles as output): start from BX in BFS order
    out_ref[...] = dabx_ref[...][:, D:]

    row = lax.broadcasted_iota(jnp.int32, (P, 1), 0)
    colm = lax.broadcasted_iota(jnp.int32, (P, P), 1)

    # ---- leaf -> root sweep (levels nl-2 .. 0 as parents) ----
    def up_body(k, carry):
        lvl = nl - 2 - k
        ps = lstart_ref[base + lvl]                    # parent level start
        cs = lstart_ref[base + lvl + 1]                # child  level start
        np_ = cs - ps                                  # parent level size
        w_c = dabx_ref[pl.ds(cs, P), :][:, :D]         # child edge weights (deltaA)
        child = out_ref[pl.ds(cs, P), :]               # child up values (final)
        pidx = idx_ref[pl.ds(ps, P), :]                # parent [rel_par, child_start_rel, n_child, 0]
        cst = pidx[:, 1:2]
        nch = pidx[:, 2:3]
        gate = (colm >= cst) & (colm < cst + nch) & (row < np_)
        m = jnp.where(gate, 1.0, 0.0)                  # (P parents, P children) selection
        contrib = jnp.dot(m, w_c * child, preferred_element_type=jnp.float32)
        out_ref[pl.ds(ps, P), :] = out_ref[pl.ds(ps, P), :] + contrib
        return carry

    lax.fori_loop(0, nl - 1, up_body, 0)

    # ---- root -> leaf sweep (levels 1 .. nl-1 as children) ----
    def down_body(lvl, carry):
        ps = lstart_ref[base + lvl - 1]
        cs = lstart_ref[base + lvl]
        nc = lstart_ref[base + lvl + 1] - cs           # child level size
        w_c = dabx_ref[pl.ds(cs, P), :][:, :D]
        child_up = out_ref[pl.ds(cs, P), :]            # still up values for this level
        rel = idx_ref[pl.ds(cs, P), :][:, 0:1]         # parent position within parent level
        m = jnp.where(rel == colm, 1.0, 0.0)           # (P children, P parents) gather matrix
        parent_out = out_ref[pl.ds(ps, P), :]          # finalized parent outputs
        par_g = jnp.dot(m, parent_out, preferred_element_type=jnp.float32)
        new = child_up + w_c * (par_g - w_c * child_up)
        out_ref[pl.ds(cs, P), :] = jnp.where(row < nc, new, child_up)
        return carry

    lax.fori_loop(1, nl, down_body, 0)


def _tree_scan_call(dabx_bfs, idx_pack, nlev, lstart_flat, B, L_pad, de, P, ls_stride):
    kernel = functools.partial(_tree_scan_kernel, LVL_PAD=P, LS_STRIDE=ls_stride)
    grid_spec = pltpu.PrefetchScalarGridSpec(
        num_scalar_prefetch=2,
        grid=(B,),
        in_specs=[pl.BlockSpec((None, L_pad, 2 * de), lambda b, nl, ls: (b, 0, 0)),
                  pl.BlockSpec((None, L_pad, 4), lambda b, nl, ls: (b, 0, 0))],
        out_specs=pl.BlockSpec((None, L_pad, de), lambda b, nl, ls: (b, 0, 0)),
    )
    return pl.pallas_call(
        kernel,
        grid_spec=grid_spec,
        out_shape=jax.ShapeDtypeStruct((B, L_pad, de), jnp.float32),
        compiler_params=pltpu.CompilerParams(dimension_semantics=("parallel",)),
    )(nlev, lstart_flat, dabx_bfs, idx_pack)


# ----------------------------------------------------------------------------
# [K4] h_norm -> *C -> +D*x -> out_norm -> *z -> out_proj (lane-dense 128-wide output slab)
# ----------------------------------------------------------------------------
def _finalize_kernel(agg_ref, cs_ref, xz_ref, ds_ref, hg_ref, hb_ref,
                     og_ref, ob_ref, wout_ref, out_ref):
    eps = 1e-5
    de = agg_ref.shape[-1]
    xz = xz_ref[...].astype(jnp.float32)
    xf = xz[:, :de]                                                   # conv+SiLU features
    zg = xz[:, de:]                                                   # SiLU(z) gate

    h = agg_ref[...]
    mu = jnp.mean(h, axis=-1, keepdims=True)
    var = jnp.mean(jnp.square(h - mu), axis=-1, keepdims=True)
    hn = (h - mu) * lax.rsqrt(var + eps) * hg_ref[...] + hb_ref[...]  # h_norm
    y = hn * cs_ref[...]                                              # * C   (d_state == 1)
    y = y + ds_ref[...] * xf                                          # + D * x skip
    mu2 = jnp.mean(y, axis=-1, keepdims=True)
    var2 = jnp.mean(jnp.square(y - mu2), axis=-1, keepdims=True)
    yn = (y - mu2) * lax.rsqrt(var2 + eps) * og_ref[...] + ob_ref[...]  # out_norm
    y2 = yn * zg                                                      # gate
    out_ref[...] = jnp.dot(y2.astype(jnp.bfloat16), wout_ref[...],
                           preferred_element_type=jnp.float32)        # (TM, 128) lane-dense


def _finalize_call(agg, cs, xz, p):
    BL, de = agg.shape
    outw = p["w_out"].shape[1]                                        # d_model padded to 128
    TM = min(512, BL)                                                 # large tiles: ~85% HBM roofline
    return pl.pallas_call(
        _finalize_kernel,
        grid=(pl.cdiv(BL, TM),),
        in_specs=[pl.BlockSpec((TM, de), lambda r: (r, 0)),
                  pl.BlockSpec((TM, 1), lambda r: (r, 0)),
                  pl.BlockSpec((TM, 2 * de), lambda r: (r, 0)),
                  pl.BlockSpec((1, de), lambda r: (0, 0)),
                  pl.BlockSpec((1, de), lambda r: (0, 0)),
                  pl.BlockSpec((1, de), lambda r: (0, 0)),
                  pl.BlockSpec((1, de), lambda r: (0, 0)),
                  pl.BlockSpec((1, de), lambda r: (0, 0)),
                  pl.BlockSpec((de, outw), lambda r: (0, 0))],
        out_specs=pl.BlockSpec((TM, outw), lambda r: (r, 0)),
        out_shape=jax.ShapeDtypeStruct((BL, outw), jnp.float32),
        compiler_params=pltpu.CompilerParams(dimension_semantics=("parallel",)),
    )(agg, cs, xz, p["Ds"], p["h_gamma"], p["h_beta"], p["o_gamma"], p["o_beta"], p["w_out"])


# ----------------------------------------------------------------------------
# Host-side sparse Prim MST (4-neighbour grid, O(E log V)) + BFS ordering with level /
# child-range bookkeeping for the level-synchronous device sweep.
# TODO(synk): Boruvka MST + `_C.bfs_forward` are data-dependent sequential graph algorithms
# with no clean Pallas equivalent; run on host (the reference runs them under no_grad()).
# ----------------------------------------------------------------------------
def _mst_bfs_host(ver_w, hor_w, H, W):
    L = H * W
    nbrs = [[] for _ in range(L)]
    for i in range(H - 1):
        for j in range(W):
            u, v = i * W + j, (i + 1) * W + j
            w = float(ver_w[i * W + j])
            nbrs[u].append((v, w)); nbrs[v].append((u, w))
    for i in range(H):
        for j in range(W - 1):
            u, v = i * W + j, i * W + j + 1
            w = float(hor_w[i * W + j])
            nbrs[u].append((v, w)); nbrs[v].append((u, w))

    # sparse Prim with a heap
    in_tree = np.zeros(L, bool)
    adj = [[] for _ in range(L)]
    heap = [(0.0, 0, 0)]
    cnt = 0
    while heap and cnt < L:
        w, v, u = heapq.heappop(heap)
        if in_tree[v]:
            continue
        in_tree[v] = True
        cnt += 1
        if v != u:
            adj[u].append(v); adj[v].append(u)
        for nb, nw in nbrs[v]:
            if not in_tree[nb]:
                heapq.heappush(heap, (nw, nb, v))

    # BFS from vertex 0 (levels are contiguous; each node's children are contiguous)
    sorted_index = np.zeros(L, np.int32)
    parent_pos = np.zeros(L, np.int32)
    level_of = np.zeros(L, np.int32)
    pos_of = np.zeros(L, np.int32)
    visited = np.zeros(L, bool); visited[0] = True
    parent_vertex = {0: 0}
    q = deque([0]); idx = 0
    while q:
        v = q.popleft()
        sorted_index[idx] = v
        pos_of[v] = idx
        pp = pos_of[parent_vertex[v]]
        parent_pos[idx] = pp
        level_of[idx] = 0 if idx == 0 else level_of[pp] + 1
        idx += 1
        for nb in adj[v]:
            if not visited[nb]:
                visited[nb] = True
                parent_vertex[nb] = v
                q.append(nb)

    depth = int(level_of[L - 1]) + 1
    lstart = np.array([int(np.searchsorted(level_of, l)) for l in range(depth + 1)], np.int32)
    n_child = np.zeros(L, np.int32)
    c_start = np.zeros(L, np.int32)
    for j in range(1, L):
        pj = parent_pos[j]
        if n_child[pj] == 0:
            c_start[pj] = j
        n_child[pj] += 1
    c_start_rel = np.zeros(L, np.int32)
    rel_par = np.zeros(L, np.int32)
    for i in range(L):
        if n_child[i] > 0:
            c_start_rel[i] = c_start[i] - lstart[level_of[i] + 1]
        if i > 0:
            rel_par[i] = parent_pos[i] - lstart[level_of[i] - 1]
    return sorted_index, pos_of, rel_par, c_start_rel, n_child, lstart, depth


# ----------------------------------------------------------------------------
# Full Tree_SSM forward
# ----------------------------------------------------------------------------
def tree_ssm_forward(x, p):
    B, H, W, dm = x.shape
    L = H * W
    de = p["conv_w"].shape[1]

    # [K1] fused in_proj + SiLU(z) + conv + SiLU + packed projections + MST edge weights
    xz, dabx, cs, ver, hor = _in_ssm_call(x, p)

    # host MST + BFS (only the tiny edge-weight arrays cross to the host)
    # TODO(synk): overlap this host round-trip with device work (async transfer / callback).
    ver_np, hor_np = jax.device_get((ver, hor))
    si_np = np.zeros((B, L), np.int32)
    inv_np = np.zeros((B, L), np.int32)
    rel_l, csr_l, nch_l, ls_l, dep_l = [], [], [], [], []
    maxlev = 1
    for b in range(B):
        si, pos, rel, csr, nch, ls, depth = _mst_bfs_host(ver_np[b, :, 0], hor_np[b, :, 0], H, W)
        si_np[b] = si
        inv_np[b] = pos
        rel_l.append(rel); csr_l.append(csr); nch_l.append(nch); ls_l.append(ls); dep_l.append(depth)
        maxlev = max(maxlev, int(np.diff(ls).max()))

    P = max(8, ((maxlev + 7) // 8) * 8)                 # per-level batch width (static)
    L_pad = ((L + P + 7) // 8) * 8                      # pad so dynamic windows stay in bounds
    ls_stride = L + 1
    lstart = np.full((B, ls_stride), L, np.int32)
    idx_pack = np.zeros((B, L_pad, 4), np.int32)        # [rel_par, child_start_rel, n_child, 0]
    idx_pack[:, :, 0] = -1
    for b in range(B):
        lstart[b, :dep_l[b] + 1] = ls_l[b]
        idx_pack[b, :L, 0] = rel_l[b]
        idx_pack[b, :L, 1] = csr_l[b]
        idx_pack[b, :L, 2] = nch_l[b]
    nlev = jnp.asarray(np.asarray(dep_l, np.int32))
    lstart_d = jnp.asarray(lstart.reshape(-1))
    idx_d = jnp.asarray(idx_pack)
    si = jnp.asarray(si_np)
    inv = jnp.asarray(inv_np)

    # permute [deltaA | BX] into BFS order and pad (small mem-bound XLA gather)
    dabx_r = dabx.reshape(B, L, 2 * de)
    dabx_bfs = jax.vmap(lambda a, i: a[i])(dabx_r, si)
    dabx_bfs = jnp.pad(dabx_bfs, ((0, 0), (0, L_pad - L), (0, 0)))

    # [K3] level-synchronous tree-scan aggregation
    out_bfs = _tree_scan_call(dabx_bfs, idx_d, nlev, lstart_d, B, L_pad, de, P, ls_stride)

    # back to raster order via the inverse permutation
    agg = jax.vmap(lambda a, i: a[i])(out_bfs, inv)     # (B, L, de)

    # [K4] norms, *C, +D*x, gate, out_proj
    out = _finalize_call(agg.reshape(B * L, de), cs, xz, p)
    return out[:, :dm].reshape(B, H, W, dm).astype(x.dtype)


# ----------------------------------------------------------------------------
# Deterministic parameter init (shapes follow Tree_SSM.__init__; d_state=1)
# ----------------------------------------------------------------------------
def init_params(key, d_model=32, d_state=1, ssm_ratio=2.0,
                dt_min=0.001, dt_max=0.1, dt_init_floor=1e-4):
    de = int(ssm_ratio * d_model)          # d_expand
    di = de                                # d_inner (ssm_rank_ratio == ssm_ratio)
    R = math.ceil(d_model / 16)            # dt_rank
    N = d_state                            # d_state (== 1 for the tree-scanning SSM)
    ks = jax.random.split(key, 8)

    def uni(k, shape, s):
        return jax.random.uniform(k, shape, jnp.float32, -s, s)

    w_in = uni(ks[0], (d_model, 2 * de), 1.0 / np.sqrt(d_model))      # in_proj (bias=False)
    conv_w = uni(ks[1], (9, de), 1.0 / 3.0)                           # depthwise 3x3, (tap, C)
    conv_b = uni(ks[2], (1, de), 1.0 / 3.0)
    x_proj_w = uni(ks[3], (di, R + 2 * N), 1.0 / np.sqrt(di))         # x_proj weight^T
    dt_w = uni(ks[4], (R, di), R ** -0.5)                             # dt_projs_weight^T
    dt = jnp.exp(jax.random.uniform(ks[5], (di,)) * (np.log(dt_max) - np.log(dt_min))
                 + np.log(dt_min))
    dt = jnp.maximum(dt, dt_init_floor)
    dt_bias = dt + jnp.log(-jnp.expm1(-dt))                           # inv-softplus init
    A_logs = jnp.tile(jnp.log(jnp.arange(1, N + 1, dtype=jnp.float32))[None, :], (di, 1))
    A = -jnp.exp(A_logs)[:, 0]                                        # (di,)  (N == 1)
    Ds = jnp.ones((di,), jnp.float32)
    w_out = uni(ks[6], (de, d_model), 1.0 / np.sqrt(de))              # out_proj (bias=False)

    # fold rank-R dt projection and pack [dt_eff | w_B | w_C | 0] into one lane-dense weight
    w_dtr = x_proj_w[:, :R]
    w_B = x_proj_w[:, R:R + N]
    w_C = x_proj_w[:, R + N:]
    w_dt_eff = w_dtr @ dt_w                                           # (di, di) f32
    pack = ((di + 2 * N + 127) // 128) * 128
    w_pack = jnp.zeros((di, pack), jnp.float32)
    w_pack = w_pack.at[:, :di].set(w_dt_eff)
    w_pack = w_pack.at[:, di:di + N].set(w_B)
    w_pack = w_pack.at[:, di + N:di + 2 * N].set(w_C)

    # lane-dense out_proj weight (d_model padded to 128 lanes)
    outw = ((d_model + 127) // 128) * 128
    w_out_p = jnp.zeros((de, outw), jnp.float32).at[:, :d_model].set(w_out)

    return dict(
        w_in=w_in.astype(jnp.bfloat16),                               # MXU operands in bf16
        conv_w=conv_w, conv_b=conv_b,
        w_pack=w_pack.astype(jnp.bfloat16),
        dt_bias=dt_bias.reshape(1, di), A=A.reshape(1, di),
        Ds=Ds.reshape(1, di),
        h_gamma=jnp.ones((1, di), jnp.float32), h_beta=jnp.zeros((1, di), jnp.float32),
        o_gamma=jnp.ones((1, di), jnp.float32), o_beta=jnp.zeros((1, di), jnp.float32),
        w_out=w_out_p.astype(jnp.bfloat16),
    )


if __name__ == "__main__":
    key = jax.random.PRNGKey(0)
    pkey, xkey = jax.random.split(key)

    B, H, W, d_model = 2, 8, 8, 32
    params = init_params(pkey, d_model=d_model, d_state=1)
    x = jax.random.normal(xkey, (B, H, W, d_model), jnp.float32)

    out = tree_ssm_forward(x, params)
    out = jax.block_until_ready(out)

    assert out.shape == (B, H, W, d_model), out.shape
    assert bool(jnp.all(jnp.isfinite(out)))
    print("KERNEL_OK")
</pallas_src>

<mosaic_0001>
module attributes {stable_mosaic.version = 11 : i64} {
  func.func @_in_ssm_kernel(%arg0: i32, %arg1: memref<1x8x8x32xf32, #tpu.memory_space<vmem>>, %arg2: memref<32x128xbf16, #tpu.memory_space<vmem>>, %arg3: memref<9x64xf32, #tpu.memory_space<vmem>>, %arg4: memref<1x64xf32, #tpu.memory_space<vmem>>, %arg5: memref<64x128xbf16, #tpu.memory_space<vmem>>, %arg6: memref<1x64xf32, #tpu.memory_space<vmem>>, %arg7: memref<1x64xf32, #tpu.memory_space<vmem>>, %arg8: memref<64x128xbf16, #tpu.memory_space<vmem>>, %arg9: memref<64x128xf32, #tpu.memory_space<vmem>>, %arg10: memref<64x1xf32, #tpu.memory_space<vmem>>, %arg11: memref<1x56x1xf32, #tpu.memory_space<vmem>>, %arg12: memref<1x63x1xf32, #tpu.memory_space<vmem>>, %arg13: memref<10x10x64xf32, #tpu.memory_space<vmem>>) attributes {dimension_semantics = [#tpu.dimension_semantics<parallel>], iteration_bounds = array<i64: 2>, scalar_prefetch = 0 : i64, scratch_operands = 1 : i64, tpu.core_type = #tpu.core_type<tc>, window_params = [{transform_indices = @transform_0, window_bounds = array<i64: 1, 8, 8, 32>}, {pipeline_mode = #tpu.pipeline_mode<synchronous>, transform_indices = @transform_1, window_bounds = array<i64: 32, 128>}, {pipeline_mode = #tpu.pipeline_mode<synchronous>, transform_indices = @transform_2, window_bounds = array<i64: 9, 64>}, {pipeline_mode = #tpu.pipeline_mode<synchronous>, transform_indices = @transform_3, window_bounds = array<i64: 1, 64>}, {pipeline_mode = #tpu.pipeline_mode<synchronous>, transform_indices = @transform_4, window_bounds = array<i64: 64, 128>}, {pipeline_mode = #tpu.pipeline_mode<synchronous>, transform_indices = @transform_5, window_bounds = array<i64: 1, 64>}, {pipeline_mode = #tpu.pipeline_mode<synchronous>, transform_indices = @transform_6, window_bounds = array<i64: 1, 64>}, {transform_indices = @transform_7, window_bounds = array<i64: 64, 128>}, {transform_indices = @transform_8, window_bounds = array<i64: 64, 128>}, {transform_indices = @transform_9, window_bounds = array<i64: 64, 1>}, {transform_indices = @transform_10, window_bounds = array<i64: 1, 56, 1>}, {transform_indices = @transform_11, window_bounds = array<i64: 1, 63, 1>}]} {
    %c0 = arith.constant 0 : index
    %c0_0 = arith.constant 0 : index
    %c0_1 = arith.constant 0 : index
    %c0_2 = arith.constant 0 : index
    %0 = vector.load %arg1[%c0, %c0_0, %c0_1, %c0_2] : memref<1x8x8x32xf32, #tpu.memory_space<vmem>>, vector<1x8x8x32xf32>
    %1 = vector.shape_cast %0 : vector<1x8x8x32xf32> to vector<8x8x32xf32>
    %2 = vector.shape_cast %1 : vector<8x8x32xf32> to vector<64x32xf32>
    %3 = arith.truncf %2 : vector<64x32xf32> to vector<64x32xbf16>
    %c0_3 = arith.constant 0 : index
    %c0_4 = arith.constant 0 : index
    %4 = vector.load %arg2[%c0_3, %c0_4] : memref<32x128xbf16, #tpu.memory_space<vmem>>, vector<32x128xbf16>
    %cst = arith.constant dense<0.000000e+00> : vector<64x128xf32>
    %5 = tpu.matmul %3, %4, %cst {dimension_numbers = #tpu.dot_dimension_numbers<[1], [0], [0], [1], [0, 0, 1, 1], [], []>} : vector<64x32xbf16>, vector<32x128xbf16>, vector<64x128xf32> -> vector<64x128xf32>
    %6 = vector.extract_strided_slice %5 {offsets = [0, 64], sizes = [64, 64], strides = [1, 1]} : vector<64x128xf32> to vector<64x64xf32>
    %7 = math.absf %6 : vector<64x64xf32>
    %cst_5 = arith.constant 0.000000e+00 : f32
    %8 = vector.broadcast %cst_5 : f32 to vector<64x64xf32>
    %9 = arith.subf %8, %7 : vector<64x64xf32>
    %10 = math.exp %9 : vector<64x64xf32>
    %cst_6 = arith.constant 0.000000e+00 : f32
    %11 = vector.broadcast %cst_6 : f32 to vector<64x64xf32>
    %12 = arith.cmpf oge, %6, %11 : vector<64x64xf32>
    %cst_7 = arith.constant 1.000000e+00 : f32
    %13 = vector.broadcast %cst_7 : f32 to vector<64x64xf32>
    %14 = arith.addf %13, %10 : vector<64x64xf32>
    %cst_8 = arith.constant 1.000000e+00 : f32
    %15 = vector.broadcast %cst_8 : f32 to vector<64x64xf32>
    %16 = arith.divf %15, %14 : vector<64x64xf32>
    %cst_9 = arith.constant 1.000000e+00 : f32
    %17 = vector.broadcast %cst_9 : f32 to vector<64x64xf32>
    %18 = arith.addf %17, %10 : vector<64x64xf32>
    %19 = arith.divf %10, %18 : vector<64x64xf32>
    %20 = arith.select %12, %16, %19 : vector<64x64xi1>, vector<64x64xf32>
    %21 = arith.mulf %6, %20 : vector<64x64xf32>
    %cst_10 = arith.constant 0.000000e+00 : f32
    %22 = vector.broadcast %cst_10 : f32 to vector<1x10x64xf32>
    %cst_11 = arith.constant 0.000000e+00 : f32
    %23 = vector.broadcast %cst_11 : f32 to vector<10x1x64xf32>
    %c0_12 = arith.constant 0 : index
    %c0_13 = arith.constant 0 : index
    %c0_14 = arith.constant 0 : index
    %24 = vector.load %arg13[%c0_12, %c0_13, %c0_14] : memref<10x10x64xf32, #tpu.memory_space<vmem>>, vector<1x10x64xf32>
    tpu.vector_store %arg13[%c0_12, %c0_13, %c0_14], %22 {strides = array<i32>} : memref<10x10x64xf32, #tpu.memory_space<vmem>>, vector<1x10x64xf32>,
    %c9 = arith.constant 9 : index
    %c0_15 = arith.constant 0 : index
    %c0_16 = arith.constant 0 : index
    %25 = vector.load %arg13[%c9, %c0_15, %c0_16] : memref<10x10x64xf32, #tpu.memory_space<vmem>>, vector<1x10x64xf32>
    tpu.vector_store %arg13[%c9, %c0_15, %c0_16], %22 {strides = array<i32>} : memref<10x10x64xf32, #tpu.memory_space<vmem>>, vector<1x10x64xf32>,
    %c0_17 = arith.constant 0 : index
    %c0_18 = arith.constant 0 : index
    %c0_19 = arith.constant 0 : index
    %26 = vector.load %arg13[%c0_17, %c0_18, %c0_19] : memref<10x10x64xf32, #tpu.memory_space<vmem>>, vector<10x1x64xf32>
    tpu.vector_store %arg13[%c0_17, %c0_18, %c0_19], %23 {strides = array<i32>} : memref<10x10x64xf32, #tpu.memory_space<vmem>>, vector<10x1x64xf32>,
    %c0_20 = arith.constant 0 : index
    %c9_21 = arith.constant 9 : index
    %c0_22 = arith.constant 0 : index
    %27 = vector.load %arg13[%c0_20, %c9_21, %c0_22] : memref<10x10x64xf32, #tpu.memory_space<vmem>>, vector<10x1x64xf32>
    tpu.vector_store %arg13[%c0_20, %c9_21, %c0_22], %23 {strides = array<i32>} : memref<10x10x64xf32, #tpu.memory_space<vmem>>, vector<10x1x64xf32>,
    %28 = vector.extract_strided_slice %5 {offsets = [0, 0], sizes = [64, 64], strides = [1, 1]} : vector<64x128xf32> to vector<64x64xf32>
    %29 = vector.shape_cast %28 : vector<64x64xf32> to vector<8x8x64xf32>
    %c1 = arith.constant 1 : index
    %c1_23 = arith.constant 1 : index
    %c0_24 = arith.constant 0 : index
    %30 = vector.load %arg13[%c1, %c1_23, %c0_24] : memref<10x10x64xf32, #tpu.memory_space<vmem>>, vector<8x8x64xf32>
    tpu.vector_store %arg13[%c1, %c1_23, %c0_24], %29 {strides = array<i32>} : memref<10x10x64xf32, #tpu.memory_space<vmem>>, vector<8x8x64xf32>,
    %cst_25 = arith.constant 0.000000e+00 : f32
    %31 = vector.broadcast %cst_25 : f32 to vector<8x8x64xf32>
    %c0_26 = arith.constant 0 : index
    %c0_27 = arith.constant 0 : index
    %c0_28 = arith.constant 0 : index
    %32 = vector.load %arg13[%c0_26, %c0_27, %c0_28] : memref<10x10x64xf32, #tpu.memory_space<vmem>>, vector<8x8x64xf32>
    %c0_29 = arith.constant 0 : index
    %c0_30 = arith.constant 0 : index
    %33 = vector.load %arg3[%c0_29, %c0_30] : memref<9x64xf32, #tpu.memory_space<vmem>>, vector<1x64xf32>
    %34 = vector.shape_cast %33 : vector<1x64xf32> to vector<64xf32>
    %35 = vector.shape_cast %34 : vector<64xf32> to vector<1x1x64xf32>
    %36 = vector.broadcast %35 : vector<1x1x64xf32> to vector<8x8x64xf32>
    %37 = arith.mulf %32, %36 : vector<8x8x64xf32>
    %38 = arith.addf %31, %37 : vector<8x8x64xf32>
    %c0_31 = arith.constant 0 : index
    %c1_32 = arith.constant 1 : index
    %c0_33 = arith.constant 0 : index
    %39 = vector.load %arg13[%c0_31, %c1_32, %c0_33] : memref<10x10x64xf32, #tpu.memory_space<vmem>>, vector<8x8x64xf32>
    %c1_34 = arith.constant 1 : index
    %c0_35 = arith.constant 0 : index
    %40 = vector.load %arg3[%c1_34, %c0_35] : memref<9x64xf32, #tpu.memory_space<vmem>>, vector<1x64xf32>
    %41 = vector.shape_cast %40 : vector<1x64xf32> to vector<64xf32>
    %42 = vector.shape_cast %41 : vector<64xf32> to vector<1x1x64xf32>
    %43 = vector.broadcast %42 : vector<1x1x64xf32> to vector<8x8x64xf32>
    %44 = arith.mulf %39, %43 : vector<8x8x64xf32>
    %45 = arith.addf %38, %44 : vector<8x8x64xf32>
    %c0_36 = arith.constant 0 : index
    %c2 = arith.constant 2 : index
    %c0_37 = arith.constant 0 : index
    %46 = vector.load %arg13[%c0_36, %c2, %c0_37] : memref<10x10x64xf32, #tpu.memory_space<vmem>>, vector<8x8x64xf32>
    %c2_38 = arith.constant 2 : index
    %c0_39 = arith.constant 0 : index
    %47 = vector.load %arg3[%c2_38, %c0_39] : memref<9x64xf32, #tpu.memory_space<vmem>>, vector<1x64xf32>
    %48 = vector.shape_cast %47 : vector<1x64xf32> to vector<64xf32>
    %49 = vector.shape_cast %48 : vector<64xf32> to vector<1x1x64xf32>
    %50 = vector.broadcast %49 : vector<1x1x64xf32> to vector<8x8x64xf32>
    %51 = arith.mulf %46, %50 : vector<8x8x64xf32>
    %52 = arith.addf %45, %51 : vector<8x8x64xf32>
    %c1_40 = arith.constant 1 : index
    %c0_41 = arith.constant 0 : index
    %c0_42 = arith.constant 0 : index
    %53 = vector.load %arg13[%c1_40, %c0_41, %c0_42] : memref<10x10x64xf32, #tpu.memory_space<vmem>>, vector<8x8x64xf32>
    %c3 = arith.constant 3 : index
    %c0_43 = arith.constant 0 : index
    %54 = vector.load %arg3[%c3, %c0_43] : memref<9x64xf32, #tpu.memory_space<vmem>>, vector<1x64xf32>
    %55 = vector.shape_cast %54 : vector<1x64xf32> to vector<64xf32>
    %56 = vector.shape_cast %55 : vector<64xf32> to vector<1x1x64xf32>
    %57 = vector.broadcast %56 : vector<1x1x64xf32> to vector<8x8x64xf32>
    %58 = arith.mulf %53, %57 : vector<8x8x64xf32>
    %59 = arith.addf %52, %58 : vector<8x8x64xf32>
    %c1_44 = arith.constant 1 : index
    %c1_45 = arith.constant 1 : index
    %c0_46 = arith.constant 0 : index
    %60 = vector.load %arg13[%c1_44, %c1_45, %c0_46] : memref<10x10x64xf32, #tpu.memory_space<vmem>>, vector<8x8x64xf32>
    %c4 = arith.constant 4 : index
    %c0_47 = arith.constant 0 : index
    %61 = vector.load %arg3[%c4, %c0_47] : memref<9x64xf32, #tpu.memory_space<vmem>>, vector<1x64xf32>
    %62 = vector.shape_cast %61 : vector<1x64xf32> to vector<64xf32>
    %63 = vector.shape_cast %62 : vector<64xf32> to vector<1x1x64xf32>
    %64 = vector.broadcast %63 : vector<1x1x64xf32> to vector<8x8x64xf32>
    %65 = arith.mulf %60, %64 : vector<8x8x64xf32>
    %66 = arith.addf %59, %65 : vector<8x8x64xf32>
    %c1_48 = arith.constant 1 : index
    %c2_49 = arith.constant 2 : index
    %c0_50 = arith.constant 0 : index
    %67 = vector.load %arg13[%c1_48, %c2_49, %c0_50] : memref<10x10x64xf32, #tpu.memory_space<vmem>>, vector<8x8x64xf32>
    %c5 = arith.constant 5 : index
    %c0_51 = arith.constant 0 : index
    %68 = vector.load %arg3[%c5, %c0_51] : memref<9x64xf32, #tpu.memory_space<vmem>>, vector<1x64xf32>
    %69 = vector.shape_cast %68 : vector<1x64xf32> to vector<64xf32>
    %70 = vector.shape_cast %69 : vector<64xf32> to vector<1x1x64xf32>
    %71 = vector.broadcast %70 : vector<1x1x64xf32> to vector<8x8x64xf32>
    %72 = arith.mulf %67, %71 : vector<8x8x64xf32>
    %73 = arith.addf %66, %72 : vector<8x8x64xf32>
    %c2_52 = arith.constant 2 : index
    %c0_53 = arith.constant 0 : index
    %c0_54 = arith.constant 0 : index
    %74 = vector.load %arg13[%c2_52, %c0_53, %c0_54] : memref<10x10x64xf32, #tpu.memory_space<vmem>>, vector<8x8x64xf32>
    %c6 = arith.constant 6 : index
    %c0_55 = arith.constant 0 : index
    %75 = vector.load %arg3[%c6, %c0_55] : memref<9x64xf32, #tpu.memory_space<vmem>>, vector<1x64xf32>
    %76 = vector.shape_cast %75 : vector<1x64xf32> to vector<64xf32>
    %77 = vector.shape_cast %76 : vector<64xf32> to vector<1x1x64xf32>
    %78 = vector.broadcast %77 : vector<1x1x64xf32> to vector<8x8x64xf32>
    %79 = arith.mulf %74, %78 : vector<8x8x64xf32>
    %80 = arith.addf %73, %79 : vector<8x8x64xf32>
    %c2_56 = arith.constant 2 : index
    %c1_57 = arith.constant 1 : index
    %c0_58 = arith.constant 0 : index
    %81 = vector.load %arg13[%c2_56, %c1_57, %c0_58] : memref<10x10x64xf32, #tpu.memory_space<vmem>>, vector<8x8x64xf32>
    %c7 = arith.constant 7 : index
    %c0_59 = arith.constant 0 : index
    %82 = vector.load %arg3[%c7, %c0_59] : memref<9x64xf32, #tpu.memory_space<vmem>>, vector<1x64xf32>
    %83 = vector.shape_cast %82 : vector<1x64xf32> to vector<64xf32>
    %84 = vector.shape_cast %83 : vector<64xf32> to vector<1x1x64xf32>
    %85 = vector.broadcast %84 : vector<1x1x64xf32> to vector<8x8x64xf32>
    %86 = arith.mulf %81, %85 : vector<8x8x64xf32>
    %87 = arith.addf %80, %86 : vector<8x8x64xf32>
    %c2_60 = arith.constant 2 : index
    %c2_61 = arith.constant 2 : index
    %c0_62 = arith.constant 0 : index
    %88 = vector.load %arg13[%c2_60, %c2_61, %c0_62] : memref<10x10x64xf32, #tpu.memory_space<vmem>>, vector<8x8x64xf32>
    %c8 = arith.constant 8 : index
    %c0_63 = arith.constant 0 : index
    %89 = vector.load %arg3[%c8, %c0_63] : memref<9x64xf32, #tpu.memory_space<vmem>>, vector<1x64xf32>
    %90 = vector.shape_cast %89 : vector<1x64xf32> to vector<64xf32>
    %91 = vector.shape_cast %90 : vector<64xf32> to vector<1x1x64xf32>
    %92 = vector.broadcast %91 : vector<1x1x64xf32> to vector<8x8x64xf32>
    %93 = arith.mulf %88, %92 : vector<8x8x64xf32>
    %94 = arith.addf %87, %93 : vector<8x8x64xf32>
    %c0_64 = arith.constant 0 : index
    %c0_65 = arith.constant 0 : index
    %95 = vector.load %arg4[%c0_64, %c0_65] : memref<1x64xf32, #tpu.memory_space<vmem>>, vector<1x64xf32>
    %96 = vector.shape_cast %95 : vector<1x64xf32> to vector<1x1x64xf32>
    %97 = vector.broadcast %96 : vector<1x1x64xf32> to vector<8x8x64xf32>
    %98 = arith.addf %94, %97 : vector<8x8x64xf32>
    %99 = math.absf %98 : vector<8x8x64xf32>
    %cst_66 = arith.constant 0.000000e+00 : f32
    %100 = vector.broadcast %cst_66 : f32 to vector<8x8x64xf32>
    %101 = arith.subf %100, %99 : vector<8x8x64xf32>
    %102 = math.exp %101 : vector<8x8x64xf32>
    %cst_67 = arith.constant 0.000000e+00 : f32
    %103 = vector.broadcast %cst_67 : f32 to vector<8x8x64xf32>
    %104 = arith.cmpf oge, %98, %103 : vector<8x8x64xf32>
    %cst_68 = arith.constant 1.000000e+00 : f32
    %105 = vector.broadcast %cst_68 : f32 to vector<8x8x64xf32>
    %106 = arith.addf %105, %102 : vector<8x8x64xf32>
    %cst_69 = arith.constant 1.000000e+00 : f32
    %107 = vector.broadcast %cst_69 : f32 to vector<8x8x64xf32>
    %108 = arith.divf %107, %106 : vector<8x8x64xf32>
    %cst_70 = arith.constant 1.000000e+00 : f32
    %109 = vector.broadcast %cst_70 : f32 to vector<8x8x64xf32>
    %110 = arith.addf %109, %102 : vector<8x8x64xf32>
    %111 = arith.divf %102, %110 : vector<8x8x64xf32>
    %112 = arith.select %104, %108, %111 : vector<8x8x64xi1>, vector<8x8x64xf32>
    %113 = arith.mulf %98, %112 : vector<8x8x64xf32>
    %114 = vector.shape_cast %113 : vector<8x8x64xf32> to vector<64x64xf32>
    %115 = vector.extract_strided_slice %114 {offsets = [0, 0], sizes = [56, 64], strides = [1, 1]} : vector<64x64xf32> to vector<56x64xf32>
    %116 = vector.extract_strided_slice %114 {offsets = [8, 0], sizes = [56, 64], strides = [1, 1]} : vector<64x64xf32> to vector<56x64xf32>
    %117 = arith.mulf %115, %115 : vector<56x64xf32>
    %cst_71 = arith.constant dense<0.000000e+00> : vector<56xf32>
    %118 = vector.multi_reduction <add>, %117, %cst_71 [1] : vector<56x64xf32> to vector<56xf32>
    %119 = vector.shape_cast %118 : vector<56xf32> to vector<56x1xf32>
    %120 = math.sqrt %119 : vector<56x1xf32>
    %cst_72 = arith.constant 9.99999993E-9 : f32
    %121 = vector.broadcast %cst_72 : f32 to vector<56x1xf32>
    %122 = arith.maximumf %120, %121 : vector<56x1xf32>
    %123 = arith.mulf %116, %116 : vector<56x64xf32>
    %cst_73 = arith.constant dense<0.000000e+00> : vector<56xf32>
    %124 = vector.multi_reduction <add>, %123, %cst_73 [1] : vector<56x64xf32> to vector<56xf32>
    %125 = vector.shape_cast %124 : vector<56xf32> to vector<56x1xf32>
    %126 = math.sqrt %125 : vector<56x1xf32>
    %cst_74 = arith.constant 9.99999993E-9 : f32
    %127 = vector.broadcast %cst_74 : f32 to vector<56x1xf32>
    %128 = arith.maximumf %126, %127 : vector<56x1xf32>
    %129 = arith.mulf %115, %116 : vector<56x64xf32>
    %cst_75 = arith.constant dense<0.000000e+00> : vector<56xf32>
    %130 = vector.multi_reduction <add>, %129, %cst_75 [1] : vector<56x64xf32> to vector<56xf32>
    %131 = vector.shape_cast %130 : vector<56xf32> to vector<56x1xf32>
    %132 = arith.mulf %122, %128 : vector<56x1xf32>
    %133 = arith.divf %131, %132 : vector<56x1xf32>
    %cst_76 = arith.constant 0.000000e+00 : f32
    %134 = vector.broadcast %cst_76 : f32 to vector<56x1xf32>
    %135 = arith.subf %134, %133 : vector<56x1xf32>
    %136 = math.exp %135 : vector<56x1xf32>
    %c0_77 = arith.constant 0 : index
    %c0_78 = arith.constant 0 : index
    %c0_79 = arith.constant 0 : index
    %137 = vector.load %arg11[%c0_77, %c0_78, %c0_79] : memref<1x56x1xf32, #tpu.memory_space<vmem>>, vector<1x56x1xf32>
    %138 = vector.shape_cast %137 : vector<1x56x1xf32> to vector<56x1xf32>
    %139 = vector.shape_cast %136 : vector<56x1xf32> to vector<1x56x1xf32>
    tpu.vector_store %arg11[%c0_77, %c0_78, %c0_79], %139 {strides = array<i32>} : memref<1x56x1xf32, #tpu.memory_space<vmem>>, vector<1x56x1xf32>,
    %140 = vector.extract_strided_slice %114 {offsets = [0, 0], sizes = [63, 64], strides = [1, 1]} : vector<64x64xf32> to vector<63x64xf32>
    %141 = vector.extract_strided_slice %114 {offsets = [1, 0], sizes = [63, 64], strides = [1, 1]} : vector<64x64xf32> to vector<63x64xf32>
    %142 = arith.mulf %140, %140 : vector<63x64xf32>
    %cst_80 = arith.constant dense<0.000000e+00> : vector<63xf32>
    %143 = vector.multi_reduction <add>, %142, %cst_80 [1] : vector<63x64xf32> to vector<63xf32>
    %144 = vector.shape_cast %143 : vector<63xf32> to vector<63x1xf32>
    %145 = math.sqrt %144 : vector<63x1xf32>
    %cst_81 = arith.constant 9.99999993E-9 : f32
    %146 = vector.broadcast %cst_81 : f32 to vector<63x1xf32>
    %147 = arith.maximumf %145, %146 : vector<63x1xf32>
    %148 = arith.mulf %141, %141 : vector<63x64xf32>
    %cst_82 = arith.constant dense<0.000000e+00> : vector<63xf32>
    %149 = vector.multi_reduction <add>, %148, %cst_82 [1] : vector<63x64xf32> to vector<63xf32>
    %150 = vector.shape_cast %149 : vector<63xf32> to vector<63x1xf32>
    %151 = math.sqrt %150 : vector<63x1xf32>
    %cst_83 = arith.constant 9.99999993E-9 : f32
    %152 = vector.broadcast %cst_83 : f32 to vector<63x1xf32>
    %153 = arith.maximumf %151, %152 : vector<63x1xf32>
    %154 = arith.mulf %140, %141 : vector<63x64xf32>
    %cst_84 = arith.constant dense<0.000000e+00> : vector<63xf32>
    %155 = vector.multi_reduction <add>, %154, %cst_84 [1] : vector<63x64xf32> to vector<63xf32>
    %156 = vector.shape_cast %155 : vector<63xf32> to vector<63x1xf32>
    %157 = arith.mulf %147, %153 : vector<63x1xf32>
    %158 = arith.divf %156, %157 : vector<63x1xf32>
    %cst_85 = arith.constant 0.000000e+00 : f32
    %159 = vector.broadcast %cst_85 : f32 to vector<63x1xf32>
    %160 = arith.subf %159, %158 : vector<63x1xf32>
    %161 = math.exp %160 : vector<63x1xf32>
    %c0_86 = arith.constant 0 : index
    %c0_87 = arith.constant 0 : index
    %c0_88 = arith.constant 0 : index
    %162 = vector.load %arg12[%c0_86, %c0_87, %c0_88] : memref<1x63x1xf32, #tpu.memory_space<vmem>>, vector<1x63x1xf32>
    %163 = vector.shape_cast %162 : vector<1x63x1xf32> to vector<63x1xf32>
    %164 = vector.shape_cast %161 : vector<63x1xf32> to vector<1x63x1xf32>
    tpu.vector_store %arg12[%c0_86, %c0_87, %c0_88], %164 {strides = array<i32>} : memref<1x63x1xf32, #tpu.memory_space<vmem>>, vector<1x63x1xf32>,
    %165 = arith.truncf %114 : vector<64x64xf32> to vector<64x64xbf16>
    %c0_89 = arith.constant 0 : index
    %c0_90 = arith.constant 0 : index
    %166 = vector.load %arg5[%c0_89, %c0_90] : memref<64x128xbf16, #tpu.memory_space<vmem>>, vector<64x128xbf16>
    %cst_91 = arith.constant dense<0.000000e+00> : vector<64x128xf32>
    %167 = tpu.matmul %165, %166, %cst_91 {dimension_numbers = #tpu.dot_dimension_numbers<[1], [0], [0], [1], [0, 0, 1, 1], [], []>} : vector<64x64xbf16>, vector<64x128xbf16>, vector<64x128xf32> -> vector<64x128xf32>
    %168 = vector.extract_strided_slice %167 {offsets = [0, 0], sizes = [64, 64], strides = [1, 1]} : vector<64x128xf32> to vector<64x64xf32>
    %169 = vector.extract_strided_slice %167 {offsets = [0, 64], sizes = [64, 1], strides = [1, 1]} : vector<64x128xf32> to vector<64x1xf32>
    %170 = vector.extract_strided_slice %167 {offsets = [0, 65], sizes = [64, 1], strides = [1, 1]} : vector<64x128xf32> to vector<64x1xf32>
    %c0_92 = arith.constant 0 : index
    %c0_93 = arith.constant 0 : index
    %171 = vector.load %arg6[%c0_92, %c0_93] : memref<1x64xf32, #tpu.memory_space<vmem>>, vector<1x64xf32>
    %172 = vector.broadcast %171 : vector<1x64xf32> to vector<64x64xf32>
    %173 = arith.addf %168, %172 : vector<64x64xf32>
    %cst_94 = arith.constant 2.000000e+01 : f32
    %174 = vector.broadcast %cst_94 : f32 to vector<64x64xf32>
    %175 = arith.cmpf ogt, %173, %174 : vector<64x64xf32>
    %cst_95 = arith.constant 2.000000e+01 : f32
    %176 = vector.broadcast %cst_95 : f32 to vector<64x64xf32>
    %177 = arith.minimumf %173, %176 : vector<64x64xf32>
    %178 = math.exp %177 : vector<64x64xf32>
    %cst_96 = arith.constant 1.000000e+00 : f32
    %179 = vector.broadcast %cst_96 : f32 to vector<64x64xf32>
    %180 = arith.addf %179, %178 : vector<64x64xf32>
    %181 = math.log %180 : vector<64x64xf32>
    %182 = arith.select %175, %173, %181 : vector<64x64xi1>, vector<64x64xf32>
    %c0_97 = arith.constant 0 : index
    %c0_98 = arith.constant 0 : index
    %183 = vector.load %arg7[%c0_97, %c0_98] : memref<1x64xf32, #tpu.memory_space<vmem>>, vector<1x64xf32>
    %184 = vector.broadcast %183 : vector<1x64xf32> to vector<64x64xf32>
    %185 = arith.mulf %182, %184 : vector<64x64xf32>
    %186 = math.exp %185 : vector<64x64xf32>
    %187 = vector.broadcast %169 : vector<64x1xf32> to vector<64x64xf32>
    %188 = arith.mulf %182, %187 : vector<64x64xf32>
    %189 = arith.mulf %188, %114 : vector<64x64xf32>
    %190 = tpu.concatenate %114, %21 in 1 : vector<64x64xf32>, vector<64x64xf32> -> vector<64x128xf32>
    %191 = arith.truncf %190 : vector<64x128xf32> to vector<64x128xbf16>
    %c0_99 = arith.constant 0 : index
    %c0_100 = arith.constant 0 : index
    %192 = vector.load %arg8[%c0_99, %c0_100] : memref<64x128xbf16, #tpu.memory_space<vmem>>, vector<64x128xbf16>
    tpu.vector_store %arg8[%c0_99, %c0_100], %191 {strides = array<i32>} : memref<64x128xbf16, #tpu.memory_space<vmem>>, vector<64x128xbf16>,
    %193 = tpu.concatenate %186, %189 in 1 : vector<64x64xf32>, vector<64x64xf32> -> vector<64x128xf32>
    %c0_101 = arith.constant 0 : index
    %c0_102 = arith.constant 0 : index
    %194 = vector.load %arg9[%c0_101, %c0_102] : memref<64x128xf32, #tpu.memory_space<vmem>>, vector<64x128xf32>
    tpu.vector_store %arg9[%c0_101, %c0_102], %193 {strides = array<i32>} : memref<64x128xf32, #tpu.memory_space<vmem>>, vector<64x128xf32>,
    %c0_103 = arith.constant 0 : index
    %c0_104 = arith.constant 0 : index
    %195 = vector.load %arg10[%c0_103, %c0_104] : memref<64x1xf32, #tpu.memory_space<vmem>>, vector<64x1xf32>
    tpu.vector_store %arg10[%c0_103, %c0_104], %170 {strides = array<i32>} : memref<64x1xf32, #tpu.memory_space<vmem>>, vector<64x1xf32>,
    return
  }
  func.func @transform_0(%arg0: i32) -> (i32, i32, i32, i32) {
    %c0_i32 = arith.constant 0 : i32
    %c0_i32_0 = arith.constant 0 : i32
    %c0_i32_1 = arith.constant 0 : i32
    %c0_i32_2 = arith.constant 0 : i32
    return %arg0, %c0_i32, %c0_i32_0, %c0_i32_1 : i32, i32, i32, i32
  }
  func.func @transform_1(%arg0: i32) -> (i32, i32) {
    %c0_i32 = arith.constant 0 : i32
    %c0_i32_0 = arith.constant 0 : i32
    %c0_i32_1 = arith.constant 0 : i32
    return %c0_i32, %c0_i32_0 : i32, i32
  }
  func.func @transform_2(%arg0: i32) -> (i32, i32) {
    %c0_i32 = arith.constant 0 : i32
    %c0_i32_0 = arith.constant 0 : i32
    %c0_i32_1 = arith.constant 0 : i32
    return %c0_i32, %c0_i32_0 : i32, i32
  }
  func.func @transform_3(%arg0: i32) -> (i32, i32) {
    %c0_i32 = arith.constant 0 : i32
    %c0_i32_0 = arith.constant 0 : i32
    %c0_i32_1 = arith.constant 0 : i32
    return %c0_i32, %c0_i32_0 : i32, i32
  }
  func.func @transform_4(%arg0: i32) -> (i32, i32) {
    %c0_i32 = arith.constant 0 : i32
    %c0_i32_0 = arith.constant 0 : i32
    %c0_i32_1 = arith.constant 0 : i32
    return %c0_i32, %c0_i32_0 : i32, i32
  }
  func.func @transform_5(%arg0: i32) -> (i32, i32) {
    %c0_i32 = arith.constant 0 : i32
    %c0_i32_0 = arith.constant 0 : i32
    %c0_i32_1 = arith.constant 0 : i32
    return %c0_i32, %c0_i32_0 : i32, i32
  }
  func.func @transform_6(%arg0: i32) -> (i32, i32) {
    %c0_i32 = arith.constant 0 : i32
    %c0_i32_0 = arith.constant 0 : i32
    %c0_i32_1 = arith.constant 0 : i32
    return %c0_i32, %c0_i32_0 : i32, i32
  }
  func.func @transform_7(%arg0: i32) -> (i32, i32) {
    %c0_i32 = arith.constant 0 : i32
    %c0_i32_0 = arith.constant 0 : i32
    return %arg0, %c0_i32 : i32, i32
  }
  func.func @transform_8(%arg0: i32) -> (i32, i32) {
    %c0_i32 = arith.constant 0 : i32
    %c0_i32_0 = arith.constant 0 : i32
    return %arg0, %c0_i32 : i32, i32
  }
  func.func @transform_9(%arg0: i32) -> (i32, i32) {
    %c0_i32 = arith.constant 0 : i32
    %c0_i32_0 = arith.constant 0 : i32
    return %arg0, %c0_i32 : i32, i32
  }
  func.func @transform_10(%arg0: i32) -> (i32, i32, i32) {
    %c0_i32 = arith.constant 0 : i32
    %c0_i32_0 = arith.constant 0 : i32
    %c0_i32_1 = arith.constant 0 : i32
    return %arg0, %c0_i32, %c0_i32_0 : i32, i32, i32
  }
  func.func @transform_11(%arg0: i32) -> (i32, i32, i32) {
    %c0_i32 = arith.constant 0 : i32
    %c0_i32_0 = arith.constant 0 : i32
    %c0_i32_1 = arith.constant 0 : i32
    return %arg0, %c0_i32, %c0_i32_0 : i32, i32, i32
  }
}

</mosaic_0001>

<llo_original>
// kernel: tpu_custom_call.1
$region0: #{tpu_custom_call.1}
  #allocation0 [shape = 'u32[]', space=smem, size = 0x4, offset = 0x4, fixed_abs, tag = 'smem constant byte address 0x4 - core index']
  #allocation1 [shape = 'u32[144,128]{1,0:T(1,128)}', space=vmem, size = 0x12000, scoped, tag = 'internal scratch']
  #allocation2 [shape = 'f32[10,10,64]{2,1,0:T(8,128)}', space=vmem, size = 0x14000, scoped, tag = 'scratch operand']
  %s0 = inlined_call_operand.hbm [shape: f32[2,8,8,32], index: 0, kind: input, shape index: {}]
  %s1 = inlined_call_operand.hbm [shape: bf16[32,128], index: 1, kind: input, shape index: {}]
  %s2 = inlined_call_operand.hbm [shape: f32[9,64], index: 2, kind: input, shape index: {}]
  %s3 = inlined_call_operand.vmem [shape: f32[1,64], index: 3, kind: input, shape index: {}]
  %s4 = inlined_call_operand.hbm [shape: bf16[64,128], index: 4, kind: input, shape index: {}]
  %s5 = inlined_call_operand.vmem [shape: f32[1,64], index: 5, kind: input, shape index: {}]
  %s6 = inlined_call_operand.vmem [shape: f32[1,64], index: 6, kind: input, shape index: {}]
  %s7 = inlined_call_operand.hbm [shape: bf16[128,128], index: 7, kind: output, shape index: {0}]
  %s8 = inlined_call_operand.hbm [shape: f32[128,128], index: 8, kind: output, shape index: {1}]
  %s9 = inlined_call_operand.vmem [shape: f32[128,1], index: 9, kind: output, shape index: {2}]
  %s10 = inlined_call_operand.vmem [shape: f32[2,56,1], index: 10, kind: output, shape index: {3}]
  %s11 = inlined_call_operand.vmem [shape: f32[2,63,1], index: 11, kind: output, shape index: {4}]
  %12 = xla_tuple %s7, %s8, %s9, %s10, %s11
  %s13 = sld [smem:[#allocation0]]
  $region109: #{tpu_custom_call.1} parent=0
    _
  %s15 = ssub.s32 1, %s13
  %s16 = scalar_select 0, %s15, %s13
  $region1: #{tpu_custom_call.1} parent=0
    #allocation3 [shape = 'u8[65536]{0}', space=vmem, size = 0x10000, scoped, tag = 'input window, operand 0']
    #allocation4 [shape = 's32[2]{0}', space=sflag, size = 0x8, scoped, tag = 'scoped memory for tpu_custom_call.1']
    #allocation5 [shape = 's32[2]{0}', space=sflag, size = 0x8, scoped, tag = 'scoped memory for tpu_custom_call.1']
    #allocation6 [shape = 'u8[8192]{0}', space=vmem, size = 0x2000, scoped, tag = 'input window, operand 1, single buffered']
    #allocation7 [shape = 's32[1]{0}', space=sflag, size = 0x4, scoped, tag = 'scoped memory for tpu_custom_call.1']
    #allocation8 [shape = 'u8[8192]{0}', space=vmem, size = 0x2000, scoped, tag = 'input window, operand 2, single buffered']
    #allocation9 [shape = 'u8[16384]{0}', space=vmem, size = 0x4000, scoped, tag = 'input window, operand 4, single buffered']
    #allocation10 [shape = 's32[1]{0}', space=sflag, size = 0x4, scoped, tag = 'scoped memory for tpu_custom_call.1']
    #allocation11 [shape = 'u8[32768]{0}', space=vmem, size = 0x8000, scoped, tag = 'output window, operand 0']
    #allocation12 [shape = 'u8[65536]{0}', space=vmem, size = 0x10000, scoped, tag = 'output window, operand 1']
    #allocation13 [shape = 's32[2]{0}', space=sflag, size = 0x8, scoped, tag = 'scoped memory for tpu_custom_call.1']
    %17 = vsyncpa [#allocation4], 0
    %s18 = scalar_lea.sflag [#allocation4], 1
    %19 = vsyncpa %s18, 0
    %20 = vsyncpa [#allocation7], 0
    %21 = vsyncpa [#allocation10], 0
    %22 = vsyncpa [#allocation5], 0
    %s23 = scalar_lea.sflag [#allocation5], 1
    %24 = vsyncpa %s23, 0
    %25 = vsyncpa [#allocation13], 0
    %s26 = scalar_lea.sflag [#allocation13], 1
    %27 = vsyncpa %s26, 0
    loop: start=0, step=1, limit=4
    $region2: #{tpu_custom_call.1} parent=1 // loop_pre_header
      _
    $region3: #{tpu_custom_call.1} parent=1 // loop_header
      %s29 = sphi 0, %s33
      %p30 = scmp.ge.s32.totalorder %s29, 4
      %s39 = sphi 0, %s41
      %s42 = sphi 0, %s39
      %s43 = sphi 0, %s42
      %s59 = sphi 0, %s43
      %s63 = sphi 0, %s63
      %s65 = sphi 0, %s63
      %s66 = sphi 0, %s65
      %s80 = sphi 0, %s66
      %s84 = sphi 0, %s84
      %s86 = sphi 0, %s84
      %s87 = sphi 0, %s86
      %s101 = sphi 0, %s87
      %s105 = sphi 0, %s105
      %s107 = sphi 0, %s105
      %s108 = sphi 0, %s107
      %s122 = sphi 0, %s108
      %s126 = sphi 0, %s126
      %s128 = sphi 0, %s126
      %s129 = sphi 0, %s128
      %s143 = sphi 0, %s129
      %s147 = sphi 0, %s147
      %s149 = sphi 0, %s147
      %s150 = sphi 0, %s149
      %s164 = sphi 0, %s150
      %s168 = sphi 0, %s168
      %s170 = sphi 0, %s168
      %s171 = sphi 0, %s170
      %s185 = sphi 0, %s171
      %s191 = sphi 0, %s193
      %s194 = sphi 0, %s191
      %s195 = sphi 0, %s194
      %s211 = sphi 0, %s195
      %s217 = sphi 0, %s219
      %s220 = sphi 0, %s217
      %s221 = sphi 0, %s220
      %s237 = sphi 0, %s221
      %s243 = sphi 0, %s245
      %s246 = sphi 0, %s243
      %s247 = sphi 0, %s246
      %s263 = sphi 0, %s247
      %s269 = sphi 0, %s271
      %s272 = sphi 0, %s269
      %s273 = sphi 0, %s272
      %s289 = sphi 0, %s273
      %s295 = sphi 0, %s297
      %s298 = sphi 0, %s295
      %s299 = sphi 0, %s298
      %s315 = sphi 0, %s299
    $region4: #{tpu_custom_call.1} parent=1 // loop_header_branch
      %32 = sbr.rel (%p30) target = $region8
    $region5: #{tpu_custom_call.1} parent=1 // loop_body
      %s34 = ssub.s32 %s29, 1
      %s35 = ssub.s32 %s29, 2
      %s36 = sadd.s32 %s29, 1
      %s37 = ssub.s32 %s29, %s36
      %p38 = scmp.eq.s32.totalorder %s37, 0
      %s40 = sadd.s32 %s39, 1
      %s41 = scalar_select %p38, %s39, %s40
      %p44 = pneg %p38
      %p45 = scmp.eq.s32.totalorder %s29, 1
      %p46 = por %p44, %p45
      %p47 = scmp.ne.s32.totalorder %s39, %s42
      %p48 = scmp.eq.s32.totalorder %s29, 0
      %p49 = por %p47, %p48
      %p50 = scmp.ne.s32.totalorder %s39, %s42
      %p51 = scmp.eq.s32.totalorder %s34, 1
      %p52 = por %p50, %p51
      %p53 = scmp.ne.s32.totalorder %s42, %s43
      %p54 = scmp.eq.s32.totalorder %s34, 0
      %p55 = por %p53, %p54
      %p56 = scmp.ne.s32.totalorder %s42, %s43
      %p57 = scmp.eq.s32.totalorder %s35, 1
      %p58 = por %p56, %p57
      %p60 = scmp.ne.s32.totalorder %s43, %s59
      %p61 = scmp.eq.s32.totalorder %s35, 0
      %p62 = por %p60, %p61
      %s64 = sadd.s32 %s63, 1
      %p67 = scmp.eq.s32.totalorder %s29, 1
      %p68 = scmp.ne.s32.totalorder %s63, %s65
      %p69 = scmp.eq.s32.totalorder %s29, 0
      %p70 = por %p68, %p69
      %p71 = scmp.ne.s32.totalorder %s63, %s65
      %p72 = scmp.eq.s32.totalorder %s34, 1
      %p73 = por %p71, %p72
      %p74 = scmp.ne.s32.totalorder %s65, %s66
      %p75 = scmp.eq.s32.totalorder %s34, 0
      %p76 = por %p74, %p75
      %p77 = scmp.ne.s32.totalorder %s65, %s66
      %p78 = scmp.eq.s32.totalorder %s35, 1
      %p79 = por %p77, %p78
      %p81 = scmp.ne.s32.totalorder %s66, %s80
      %p82 = scmp.eq.s32.totalorder %s35, 0
      %p83 = por %p81, %p82
      %s85 = sadd.s32 %s84, 1
      %p88 = scmp.eq.s32.totalorder %s29, 1
      %p89 = scmp.ne.s32.totalorder %s84, %s86
      %p90 = scmp.eq.s32.totalorder %s29, 0
      %p91 = por %p89, %p90
      %p92 = scmp.ne.s32.totalorder %s84, %s86
      %p93 = scmp.eq.s32.totalorder %s34, 1
      %p94 = por %p92, %p93
      %p95 = scmp.ne.s32.totalorder %s86, %s87
      %p96 = scmp.eq.s32.totalorder %s34, 0
      %p97 = por %p95, %p96
      %p98 = scmp.ne.s32.totalorder %s86, %s87
      %p99 = scmp.eq.s32.totalorder %s35, 1
      %p100 = por %p98, %p99
      %p102 = scmp.ne.s32.totalorder %s87, %s101
      %p103 = scmp.eq.s32.totalorder %s35, 0
      %p104 = por %p102, %p103
      %s106 = sadd.s32 %s105, 1
      %p109 = scmp.eq.s32.totalorder %s29, 1
      %p110 = scmp.ne.s32.totalorder %s105, %s107
      %p111 = scmp.eq.s32.totalorder %s29, 0
      %p112 = por %p110, %p111
      %p113 = scmp.ne.s32.totalorder %s105, %s107
      %p114 = scmp.eq.s32.totalorder %s34, 1
      %p115 = por %p113, %p114
      %p116 = scmp.ne.s32.totalorder %s107, %s108
      %p117 = scmp.eq.s32.totalorder %s34, 0
      %p118 = por %p116, %p117
      %p119 = scmp.ne.s32.totalorder %s107, %s108
      %p120 = scmp.eq.s32.totalorder %s35, 1
      %p121 = por %p119, %p120
      %p123 = scmp.ne.s32.totalorder %s108, %s122
      %p124 = scmp.eq.s32.totalorder %s35, 0
      %p125 = por %p123, %p124
      %s127 = sadd.s32 %s126, 1
      %p130 = scmp.eq.s32.totalorder %s29, 1
      %p131 = scmp.ne.s32.totalorder %s126, %s128
      %p132 = scmp.eq.s32.totalorder %s29, 0
      %p133 = por %p131, %p132
      %p134 = scmp.ne.s32.totalorder %s126, %s128
      %p135 = scmp.eq.s32.totalorder %s34, 1
      %p136 = por %p134, %p135
      %p137 = scmp.ne.s32.totalorder %s128, %s129
      %p138 = scmp.eq.s32.totalorder %s34, 0
      %p139 = por %p137, %p138
      %p140 = scmp.ne.s32.totalorder %s128, %s129
      %p141 = scmp.eq.s32.totalorder %s35, 1
      %p142 = por %p140, %p141
      %p144 = scmp.ne.s32.totalorder %s129, %s143
      %p145 = scmp.eq.s32.totalorder %s35, 0
      %p146 = por %p144, %p145
      %s148 = sadd.s32 %s147, 1
      %p151 = scmp.eq.s32.totalorder %s29, 1
      %p152 = scmp.ne.s32.totalorder %s147, %s149
      %p153 = scmp.eq.s32.totalorder %s29, 0
      %p154 = por %p152, %p153
      %p155 = scmp.ne.s32.totalorder %s147, %s149
      %p156 = scmp.eq.s32.totalorder %s34, 1
      %p157 = por %p155, %p156
      %p158 = scmp.ne.s32.totalorder %s149, %s150
      %p159 = scmp.eq.s32.totalorder %s34, 0
      %p160 = por %p158, %p159
      %p161 = scmp.ne.s32.totalorder %s149, %s150
      %p162 = scmp.eq.s32.totalorder %s35, 1
      %p163 = por %p161, %p162
      %p165 = scmp.ne.s32.totalorder %s150, %s164
      %p166 = scmp.eq.s32.totalorder %s35, 0
      %p167 = por %p165, %p166
      %s169 = sadd.s32 %s168, 1
      %p172 = scmp.eq.s32.totalorder %s29, 1
      %p173 = scmp.ne.s32.totalorder %s168, %s170
      %p174 = scmp.eq.s32.totalorder %s29, 0
      %p175 = por %p173, %p174
      %p176 = scmp.ne.s32.totalorder %s168, %s170
      %p177 = scmp.eq.s32.totalorder %s34, 1
      %p178 = por %p176, %p177
      %p179 = scmp.ne.s32.totalorder %s170, %s171
      %p180 = scmp.eq.s32.totalorder %s34, 0
      %p181 = por %p179, %p180
      %p182 = scmp.ne.s32.totalorder %s170, %s171
      %p183 = scmp.eq.s32.totalorder %s35, 1
      %p184 = por %p182, %p183
      %p186 = scmp.ne.s32.totalorder %s171, %s185
      %p187 = scmp.eq.s32.totalorder %s35, 0
      %p188 = por %p186, %p187
      %s189 = ssub.s32 %s29, %s36
      %p190 = scmp.eq.s32.totalorder %s189, 0
      %s192 = sadd.s32 %s191, 1
      %s193 = scalar_select %p190, %s191, %s192
      %p196 = pneg %p190
      %p197 = scmp.eq.s32.totalorder %s29, 1
      %p198 = por %p196, %p197
      %p199 = scmp.ne.s32.totalorder %s191, %s194
      %p200 = scmp.eq.s32.totalorder %s29, 0
      %p201 = por %p199, %p200
      %p202 = scmp.ne.s32.totalorder %s191, %s194
      %p203 = scmp.eq.s32.totalorder %s34, 1
      %p204 = por %p202, %p203
      %p205 = scmp.ne.s32.totalorder %s194, %s195
      %p206 = scmp.eq.s32.totalorder %s34, 0
      %p207 = por %p205, %p206
      %p208 = scmp.ne.s32.totalorder %s194, %s195
      %p209 = scmp.eq.s32.totalorder %s35, 1
      %p210 = por %p208, %p209
      %p212 = scmp.ne.s32.totalorder %s195, %s211
      %p213 = scmp.eq.s32.totalorder %s35, 0
      %p214 = por %p212, %p213
      %s215 = ssub.s32 %s29, %s36
      %p216 = scmp.eq.s32.totalorder %s215, 0
      %s218 = sadd.s32 %s217, 1
      %s219 = scalar_select %p216, %s217, %s218
      %p222 = pneg %p216
      %p223 = scmp.eq.s32.totalorder %s29, 1
      %p224 = por %p222, %p223
      %p225 = scmp.ne.s32.totalorder %s217, %s220
      %p226 = scmp.eq.s32.totalorder %s29, 0
      %p227 = por %p225, %p226
      %p228 = scmp.ne.s32.totalorder %s217, %s220
      %p229 = scmp.eq.s32.totalorder %s34, 1
      %p230 = por %p228, %p229
      %p231 = scmp.ne.s32.totalorder %s220, %s221
      %p232 = scmp.eq.s32.totalorder %s34, 0
      %p233 = por %p231, %p232
      %p234 = scmp.ne.s32.totalorder %s220, %s221
      %p235 = scmp.eq.s32.totalorder %s35, 1
      %p236 = por %p234, %p235
      %p238 = scmp.ne.s32.totalorder %s221, %s237
      %p239 = scmp.eq.s32.totalorder %s35, 0
      %p240 = por %p238, %p239
      %s241 = ssub.s32 %s29, %s36
      %p242 = scmp.eq.s32.totalorder %s241, 0
      %s244 = sadd.s32 %s243, 1
      %s245 = scalar_select %p242, %s243, %s244
      %p248 = pneg %p242
      %p249 = scmp.eq.s32.totalorder %s29, 1
      %p250 = por %p248, %p249
      %p251 = scmp.ne.s32.totalorder %s243, %s246
      %p252 = scmp.eq.s32.totalorder %s29, 0
      %p253 = por %p251, %p252
      %p254 = scmp.ne.s32.totalorder %s243, %s246
      %p255 = scmp.eq.s32.totalorder %s34, 1
      %p256 = por %p254, %p255
      %p257 = scmp.ne.s32.totalorder %s246, %s247
      %p258 = scmp.eq.s32.totalorder %s34, 0
      %p259 = por %p257, %p258
      %p260 = scmp.ne.s32.totalorder %s246, %s247
      %p261 = scmp.eq.s32.totalorder %s35, 1
      %p262 = por %p260, %p261
      %p264 = scmp.ne.s32.totalorder %s247, %s263
      %p265 = scmp.eq.s32.totalorder %s35, 0
      %p266 = por %p264, %p265
      %s267 = ssub.s32 %s29, %s36
      %p268 = scmp.eq.s32.totalorder %s267, 0
      %s270 = sadd.s32 %s269, 1
      %s271 = scalar_select %p268, %s269, %s270
      %p274 = pneg %p268
      %p275 = scmp.eq.s32.totalorder %s29, 1
      %p276 = por %p274, %p275
      %p277 = scmp.ne.s32.totalorder %s269, %s272
      %p278 = scmp.eq.s32.totalorder %s29, 0
      %p279 = por %p277, %p278
      %p280 = scmp.ne.s32.totalorder %s269, %s272
      %p281 = scmp.eq.s32.totalorder %s34, 1
      %p282 = por %p280, %p281
      %p283 = scmp.ne.s32.totalorder %s272, %s273
      %p284 = scmp.eq.s32.totalorder %s34, 0
      %p285 = por %p283, %p284
      %p286 = scmp.ne.s32.totalorder %s272, %s273
      %p287 = scmp.eq.s32.totalorder %s35, 1
      %p288 = por %p286, %p287
      %p290 = scmp.ne.s32.totalorder %s273, %s289
      %p291 = scmp.eq.s32.totalorder %s35, 0
      %p292 = por %p290, %p291
      %s293 = ssub.s32 %s29, %s36
      %p294 = scmp.eq.s32.totalorder %s293, 0
      %s296 = sadd.s32 %s295, 1
      %s297 = scalar_select %p294, %s295, %s296
      %p300 = pneg %p294
      %p301 = scmp.eq.s32.totalorder %s29, 1
      %p302 = por %p300, %p301
      %p303 = scmp.ne.s32.totalorder %s295, %s298
      %p304 = scmp.eq.s32.totalorder %s29, 0
      %p305 = por %p303, %p304
      %p306 = scmp.ne.s32.totalorder %s295, %s298
      %p307 = scmp.eq.s32.totalorder %s34, 1
      %p308 = por %p306, %p307
      %p309 = scmp.ne.s32.totalorder %s298, %s299
      %p310 = scmp.eq.s32.totalorder %s34, 0
      %p311 = por %p309, %p310
      %p312 = scmp.ne.s32.totalorder %s298, %s299
      %p313 = scmp.eq.s32.totalorder %s35, 1
      %p314 = por %p312, %p313
      %p316 = scmp.ne.s32.totalorder %s299, %s315
      %p317 = scmp.eq.s32.totalorder %s35, 0
      %p318 = por %p316, %p317
      %p319 = scmp.le.s32.totalorder 1, %s29
      %p320 = scmp.lt.s32.totalorder %s29, 3
      %p321 = pnand %p319, %p320
      %p322 = pneg %p321
      // Predicated region
      $region9: #{tpu_custom_call.1} parent=5 // pred_check
        _
      $region10: #{tpu_custom_call.1} parent=5 // pred_check_branch
        %324 = sbr.rel (%p321) target = $region12
      $region11: #{tpu_custom_call.1} parent=5 // pred_region
        %s325 = ssub.s32 %s29, 1
        // Predicated region
        $region13: #{tpu_custom_call.1} parent=11 // pred_check
          %p326 = pneg %p76
        $region14: #{tpu_custom_call.1} parent=11 // pred_check_branch
          %328 = sbr.rel (%p326) target = $region16
        $region15: #{tpu_custom_call.1} parent=11 // pred_region
          %s330 = ssub.s32 256, 256
          %331 = vsyncadd [#allocation7], %s330
          %s332 = sshll.u32 [#allocation6], 4
          %s333 = int_to_ptr.vmem [resolvable:$true] %s332
          %338 = dma.hbm_to_vmem [thread:$0]  %s1, 256, %s333, [#allocation7], 64, 64, 4
        $region16: #{tpu_custom_call.1} parent=11 // pred_fallthru
          _
        // Predicated region
        $region17: #{tpu_custom_call.1} parent=11 // pred_check
          %p339 = pneg %p97
        $region18: #{tpu_custom_call.1} parent=11 // pred_check_branch
          %341 = sbr.rel (%p339) target = $region20
        $region19: #{tpu_custom_call.1} parent=11 // pred_region
          %s343 = ssub.s32 256, 256
          %344 = vsyncadd [#allocation7], %s343
          %s345 = sshll.u32 [#allocation8], 4
          %s346 = int_to_ptr.vmem [resolvable:$true] %s345
          %351 = dma.hbm_to_vmem [thread:$0]  %s2, 256, %s346, [#allocation7], 128, 128, 8
        $region20: #{tpu_custom_call.1} parent=11 // pred_fallthru
          _
        // Predicated region
        $region21: #{tpu_custom_call.1} parent=11 // pred_check
          %p352 = pneg %p118
        $region22: #{tpu_custom_call.1} parent=11 // pred_check_branch
          %354 = sbr.rel (%p352) target = $region24
        $region23: #{tpu_custom_call.1} parent=11 // pred_region
          _
        $region24: #{tpu_custom_call.1} parent=11 // pred_fallthru
          _
        // Predicated region
        $region25: #{tpu_custom_call.1} parent=11 // pred_check
          %p355 = pneg %p139
        $region26: #{tpu_custom_call.1} parent=11 // pred_check_branch
          %357 = sbr.rel (%p355) target = $region28
        $region27: #{tpu_custom_call.1} parent=11 // pred_region
          %s359 = ssub.s32 512, 512
          %360 = vsyncadd [#allocation10], %s359
          %s361 = sshll.u32 [#allocation9], 4
          %s362 = int_to_ptr.vmem [resolvable:$true] %s361
          %367 = dma.hbm_to_vmem [thread:$0]  %s4, 512, %s362, [#allocation10], 64, 64, 4
        $region28: #{tpu_custom_call.1} parent=11 // pred_fallthru
          _
        // Predicated region
        $region29: #{tpu_custom_call.1} parent=11 // pred_check
          %p368 = pneg %p160
        $region30: #{tpu_custom_call.1} parent=11 // pred_check_branch
          %370 = sbr.rel (%p368) target = $region32
        $region31: #{tpu_custom_call.1} parent=11 // pred_region
          _
        $region32: #{tpu_custom_call.1} parent=11 // pred_fallthru
          _
        // Predicated region
        $region33: #{tpu_custom_call.1} parent=11 // pred_check
          %p371 = pneg %p181
        $region34: #{tpu_custom_call.1} parent=11 // pred_check_branch
          %373 = sbr.rel (%p371) target = $region36
        $region35: #{tpu_custom_call.1} parent=11 // pred_region
          _
        $region36: #{tpu_custom_call.1} parent=11 // pred_fallthru
          _
      $region12: #{tpu_custom_call.1} parent=5 // pred_fallthru
        _
      %p374 = scmp.lt.s32.totalorder %s29, 2
      // Predicated region
      $region37: #{tpu_custom_call.1} parent=5 // pred_check
        %p375 = pneg %p374
      $region38: #{tpu_custom_call.1} parent=5 // pred_check_branch
        %377 = sbr.rel (%p375) target = $region40
      $region39: #{tpu_custom_call.1} parent=5 // pred_region
        // Predicated region
        $region41: #{tpu_custom_call.1} parent=39 // pred_check
          %p378 = pneg %p49
        $region42: #{tpu_custom_call.1} parent=39 // pred_check_branch
          %380 = sbr.rel (%p378) target = $region44
        $region43: #{tpu_custom_call.1} parent=39 // pred_region
          %s381 = sand.u32 %s39, 1
          %s382 = scalar_lea.sflag [#allocation4], %s381
          %s383 = sand.u32 %s39, 1
          %s384 = smul.addr %s383, 64
          %s385 = scalar_lea.vmem [#allocation3], %s384
          %s387 = ssub.s32 1024, 1024
          %388 = vsyncadd %s382, %s387
          %s389 = smul.addr %s29, 8
          %s390 = smul.addr %s389, 128
          %s391 = scalar_lea.hbm %s0, %s390
          %s392 = sshll.u32 %s385, 4
          %s393 = int_to_ptr.vmem [resolvable:$true] %s392
          %398 = dma.hbm_to_vmem [thread:$0]  %s391, 1024, %s393, %s382, 128, 128, 8
        $region44: #{tpu_custom_call.1} parent=39 // pred_fallthru
          _
      $region40: #{tpu_custom_call.1} parent=5 // pred_fallthru
        _
      %p399 = scmp.le.s32.totalorder 1, %s29
      %p400 = scmp.lt.s32.totalorder %s29, 3
      %p401 = pnand %p399, %p400
      %p402 = pneg %p401
      // Predicated region
      $region45: #{tpu_custom_call.1} parent=5 // pred_check
        _
      $region46: #{tpu_custom_call.1} parent=5 // pred_check_branch
        %404 = sbr.rel (%p401) target = $region48
      $region47: #{tpu_custom_call.1} parent=5 // pred_region
        %s405 = ssub.s32 %s29, 1
        %s406 = sand.u32 %s42, 1
        %s407 = scalar_lea.sflag [#allocation4], %s406
        %s408 = sand.u32 %s42, 1
        %s409 = smul.addr %s408, 64
        %s410 = scalar_lea.vmem [#allocation3], %s409
        // Predicated region
        $region49: #{tpu_custom_call.1} parent=47 // pred_check
          %p411 = pneg %p55
        $region50: #{tpu_custom_call.1} parent=47 // pred_check_branch
          %413 = sbr.rel (%p411) target = $region52
        $region51: #{tpu_custom_call.1} parent=47 // pred_region
          %414 = dma.done %s407, 1024
        $region52: #{tpu_custom_call.1} parent=47 // pred_fallthru
          _
        // Predicated region
        $region53: #{tpu_custom_call.1} parent=47 // pred_check
          %p415 = pneg %p76
        $region54: #{tpu_custom_call.1} parent=47 // pred_check_branch
          %417 = sbr.rel (%p415) target = $region56
        $region55: #{tpu_custom_call.1} parent=47 // pred_region
          %418 = dma.done [#allocation7], 256
        $region56: #{tpu_custom_call.1} parent=47 // pred_fallthru
          _
        // Predicated region
        $region57: #{tpu_custom_call.1} parent=47 // pred_check
          %p419 = pneg %p97
        $region58: #{tpu_custom_call.1} parent=47 // pred_check_branch
          %421 = sbr.rel (%p419) target = $region60
        $region59: #{tpu_custom_call.1} parent=47 // pred_region
          %422 = dma.done [#allocation7], 256
        $region60: #{tpu_custom_call.1} parent=47 // pred_fallthru
          _
        // Predicated region
        $region61: #{tpu_custom_call.1} parent=47 // pred_check
          %p423 = pneg %p139
        $region62: #{tpu_custom_call.1} parent=47 // pred_check_branch
          %425 = sbr.rel (%p423) target = $region64
        $region63: #{tpu_custom_call.1} parent=47 // pred_region
          %426 = dma.done [#allocation10], 512
        $region64: #{tpu_custom_call.1} parent=47 // pred_fallthru
          _
        %s427 = sand.u32 %s42, 1
        %s428 = scalar_lea.sflag [#allocation4], %s427
        %s429 = sand.u32 %s42, 1
        %s430 = smul.addr %s429, 64
        %s431 = scalar_lea.vmem [#allocation3], %s430
        %p432 = pneg %p55
        %p433 = pneg %p52
        %p434 = pneg %p76
        %p435 = pneg %p73
        %p436 = pneg %p97
        %p437 = pneg %p94
        %p438 = pneg %p118
        %p439 = pneg %p115
        %p440 = pneg %p139
        %p441 = pneg %p136
        %p442 = pneg %p160
        %p443 = pneg %p157
        %p444 = pneg %p181
        %p445 = pneg %p178
        %p446 = pneg %p207
        %p447 = pneg %p204
        %s448 = sand.u32 %s194, 1
        %s449 = scalar_lea.sflag [#allocation5], %s448
        %s450 = sand.u32 %s194, 1
        %s451 = smul.addr %s450, 32
        %s452 = scalar_lea.vmem [#allocation11], %s451
        %p453 = pneg %p233
        %p454 = pneg %p230
        %s455 = sand.u32 %s220, 1
        %s456 = scalar_lea.sflag [#allocation13], %s455
        %s457 = sand.u32 %s220, 1
        %s458 = smul.addr %s457, 64
        %s459 = scalar_lea.vmem [#allocation12], %s458
        %p460 = pneg %p259
        %p461 = pneg %p256
        %s462 = smul.u32 8, %s34
        %p463 = scmp.lt.s32.totalorder %s462, 15
        %s464 = scalar_select %p463, %s462, 15
        %s465 = smul.addr %s464, 8
        %s466 = scalar_lea.vmem %s9, %s465
        %p467 = pneg %p285
        %p468 = pneg %p282
        %p469 = scmp.lt.s32.totalorder %s34, 1
        %s470 = scalar_select %p469, %s34, 1
        %s471 = smul.addr %s470, 7
        %s472 = smul.addr %s471, 8
        %s473 = scalar_lea.vmem %s10, %s472
        %p474 = pneg %p311
        %p475 = pneg %p308
        %p476 = scmp.lt.s32.totalorder %s34, 1
        %s477 = scalar_select %p476, %s34, 1
        %s478 = smul.addr %s477, 8
        %s479 = smul.addr %s478, 8
        %s480 = scalar_lea.vmem %s11, %s479
        %s481 = smul.u32 8, %s34
        %s482 = smul.u32 8, %s34
        %s483 = smul.u32 8, %s34
        %p484 = scmp.lt.s32.totalorder %s483, 15
        %s485 = scalar_select %p484, %s483, 15
        %s486 = smul.addr %s485, 8
        %s487 = scalar_lea.vmem %s9, %s486
        %s488 = smul.u32 8, %s34
        %p489 = scmp.lt.s32.totalorder %s34, 1
        %s490 = scalar_select %p489, %s34, 1
        %s491 = smul.addr %s490, 7
        %s492 = smul.addr %s491, 8
        %s493 = scalar_lea.vmem %s10, %s492
        %p494 = scmp.lt.s32.totalorder %s34, 1
        %s495 = scalar_select %p494, %s34, 1
        %s496 = smul.addr %s495, 8
        %s497 = smul.addr %s496, 8
        %s498 = scalar_lea.vmem %s11, %s497
        %v500 = vld [vmem:[%s410] sm:$0xff]
        %v501 = vld [vmem:[%s410 + $0x8] sm:$0xff]
        %v502 = vld [vmem:[%s410 + $0x10] sm:$0xff]
        %v503 = vld [vmem:[%s410 + $0x18] sm:$0xff]
        %v504 = vld [vmem:[%s410 + $0x20] sm:$0xff]
        %v505 = vld [vmem:[%s410 + $0x28] sm:$0xff]
        %v506 = vld [vmem:[%s410 + $0x30] sm:$0xff]
        %v507 = vld [vmem:[%s410 + $0x38] sm:$0xff]
        %v508 = vpack.c.bf16 %v501, %v500
        %v509 = vpack.c.bf16 %v503, %v502
        %v510 = vpack.c.bf16 %v505, %v504
        %v511 = vpack.c.bf16 %v507, %v506
        %v512 = vld [vmem:[#allocation6] sm:$0xf]
        %v513 = vld [vmem:[#allocation6 + $0x4] sm:$0xf]
        %v514 = vld [vmem:[#allocation6 + $0x8] sm:$0xf]
        %v515 = vld [vmem:[#allocation6 + $0xc] sm:$0xf]
        %v520 = vunpack.c.l.b16 %v512
        %v521 = vunpack.c.l.b16 %v513
        %v522 = vunpack.c.l.b16 %v514
        %v523 = vunpack.c.l.b16 %v515
        %v524 = vpack.c.b16 %v521, %v520
        %v525 = vpack.c.b16 %v523, %v522
        %vm528 = vcmask 261120
        %v530 = vsel %vm528, %v508, 0
        %v533 = vsel %vm528, %v509, 0
        %v536 = vsel %vm528, %v510, 0
        %v539 = vsel %vm528, %v511, 0
        %541 = vmatprep.subr.bf16.mxu0 0
        %542 = vmatpush1.bf16.msra.mxu0 %v524
        %543 = vmatprep.subr.bf16.mxu0 0
        %544 = vmatpush1.bf16.msra.mxu0 %v525
        %545 = vmatprep.subr.bf16.mxu0 0
        %546 = vmatpush1.bf16.msra.mxu0 0
        %547 = vmatprep.subr.bf16.mxu0 0
        %548 = vmatpush1.bf16.msra.mxu0 0
        %549 = vmatprep.subr.bf16.mxu0 0
        %550 = vmatpush1.bf16.msra.mxu0 0
        %551 = vmatprep.subr.bf16.mxu0 0
        %552 = vmatpush1.bf16.msra.mxu0 0
        %553 = vmatprep.subr.bf16.mxu0 0
        %554 = vmatpush1.bf16.msra.mxu0 0
        %555 = vmatprep.subr.bf16.mxu0 0
        %556 = vmatpush1.bf16.msra.mxu0 0
        %557 = vmatprep.subr.bf16.mxu0 0
        %558 = vmatpush1.bf16.msra.mxu0 0
        %559 = vmatprep.subr.bf16.mxu0 0
        %560 = vmatpush1.bf16.msra.mxu0 0
        %561 = vmatprep.subr.bf16.mxu0 0
        %562 = vmatpush1.bf16.msra.mxu0 0
        %563 = vmatprep.subr.bf16.mxu0 0
        %564 = vmatpush1.bf16.msra.mxu0 0
        %565 = vmatprep.subr.bf16.mxu0 0
        %566 = vmatpush1.bf16.msra.mxu0 0
        %567 = vmatprep.subr.bf16.mxu0 0
        %568 = vmatpush1.bf16.msra.mxu0 0
        %569 = vmatprep.subr.bf16.mxu0 0
        %570 = vmatpush1.bf16.msra.mxu0 0
        %571 = vmatprep.subr.bf16.mxu0 0
        %572 = vmatpush1.bf16.msra.mxu0 0
        %573 = vmatprep.mubr.bf16.mxu0 0
        %574 = vmatmul.mubr.bf16.gmra.mrb[0].mxu0 %v530
        %v575 = vpop.f32.mrb[0].mxu0
        %v576 = vadd.f32 0.0, %v575
        %v577 = vpop.f32.mrb[0].mxu0
        %v578 = vpop.f32.mrb[0].mxu0
        %v579 = vadd.f32 0.0, %v578
        %v580 = vpop.f32.mrb[0].mxu0
        %581 = vmatprep.mubr.bf16.mxu0 0
        %582 = vmatmul.mubr.bf16.gmra.mrb[0].mxu0 %v533
        %v583 = vpop.f32.mrb[0].mxu0
        %v584 = vadd.f32 0.0, %v583
        %v585 = vpop.f32.mrb[0].mxu0
        %v586 = vpop.f32.mrb[0].mxu0
        %v587 = vadd.f32 0.0, %v586
        %v588 = vpop.f32.mrb[0].mxu0
        %589 = vmatprep.mubr.bf16.mxu0 0
        %590 = vmatmul.mubr.bf16.gmra.mrb[0].mxu0 %v536
        %v591 = vpop.f32.mrb[0].mxu0
        %v592 = vadd.f32 0.0, %v591
        %v593 = vpop.f32.mrb[0].mxu0
        %v594 = vpop.f32.mrb[0].mxu0
        %v595 = vadd.f32 0.0, %v594
        %v596 = vpop.f32.mrb[0].mxu0
        %597 = vmatprep.mubr.bf16.mxu0 0
        %598 = vmatmul.mubr.bf16.gmra.mrb[0].mxu0 %v539
        %v599 = vpop.f32.mrb[0].mxu0
        %v600 = vadd.f32 0.0, %v599
        %v601 = vpop.f32.mrb[0].mxu0
        %v602 = vpop.f32.mrb[0].mxu0
        %v603 = vadd.f32 0.0, %v602
        %v604 = vpop.f32.mrb[0].mxu0
        %605 = vdwg.mxu0
        %v606 = vand.u32 2147483647, %v576
        %v607 = vand.u32 2147483647, %v579
        %v608 = vand.u32 2147483647, %v584
        %v609 = vand.u32 2147483647, %v587
        %v610 = vand.u32 2147483647, %v592
        %v611 = vand.u32 2147483647, %v595
        %v612 = vand.u32 2147483647, %v600
        %v613 = vand.u32 2147483647, %v603
        %v614 = vsub.f32 0.0, %v606
        %v615 = vsub.f32 0.0, %v607
        %v616 = vsub.f32 0.0, %v608
        %v617 = vsub.f32 0.0, %v609
        %v618 = vsub.f32 0.0, %v610
        %v619 = vsub.f32 0.0, %v611
        %v620 = vsub.f32 0.0, %v612
        %v621 = vsub.f32 0.0, %v613
        %v622 = vmul.f32 %v614, 1.442695
        %v623 = vpow.pop %v622
        %v624 = vmul.f32 %v615, 1.442695
        %v625 = vpow.pop %v624
        %v626 = vmul.f32 %v616, 1.442695
        %v627 = vpow.pop %v626
        %v628 = vmul.f32 %v617, 1.442695
        %v629 = vpow.pop %v628
        %v630 = vmul.f32 %v618, 1.442695
        %v631 = vpow.pop %v630
        %v632 = vmul.f32 %v619, 1.442695
        %v633 = vpow.pop %v632
        %v634 = vmul.f32 %v620, 1.442695
        %v635 = vpow.pop %v634
        %v636 = vmul.f32 %v621, 1.442695
        %v637 = vpow.pop %v636
        %vm638 = vcmp.ge.f32.partialorder %v576, 0.0
        %vm639 = vcmp.ge.f32.partialorder %v579, 0.0
        %vm640 = vcmp.ge.f32.partialorder %v584, 0.0
        %vm641 = vcmp.ge.f32.partialorder %v587, 0.0
        %vm642 = vcmp.ge.f32.partialorder %v592, 0.0
        %vm643 = vcmp.ge.f32.partialorder %v595, 0.0
        %vm644 = vcmp.ge.f32.partialorder %v600, 0.0
        %vm645 = vcmp.ge.f32.partialorder %v603, 0.0
        %v646 = vadd.f32 %v623, 1.0
        %v647 = vadd.f32 %v625, 1.0
        %v648 = vadd.f32 %v627, 1.0
        %v649 = vadd.f32 %v629, 1.0
        %v650 = vadd.f32 %v631, 1.0
        %v651 = vadd.f32 %v633, 1.0
        %v652 = vadd.f32 %v635, 1.0
        %v653 = vadd.f32 %v637, 1.0
        %v654 = vrcp.pop %v646
        %v655 = vmul.f32 1.0, %v654
        %v656 = vrcp.pop %v647
        %v657 = vmul.f32 1.0, %v656
        %v658 = vrcp.pop %v648
        %v659 = vmul.f32 1.0, %v658
        %v660 = vrcp.pop %v649
        %v661 = vmul.f32 1.0, %v660
        %v662 = vrcp.pop %v650
        %v663 = vmul.f32 1.0, %v662
        %v664 = vrcp.pop %v651
        %v665 = vmul.f32 1.0, %v664
        %v666 = vrcp.pop %v652
        %v667 = vmul.f32 1.0, %v666
        %v668 = vrcp.pop %v653
        %v669 = vmul.f32 1.0, %v668
        %v670 = vmul.f32 %v623, %v654
        %v671 = vmul.f32 %v625, %v656
        %v672 = vmul.f32 %v627, %v658
        %v673 = vmul.f32 %v629, %v660
        %v674 = vmul.f32 %v631, %v662
        %v675 = vmul.f32 %v633, %v664
        %v676 = vmul.f32 %v635, %v666
        %v677 = vmul.f32 %v637, %v668
        %v678 = vsel %vm638, %v655, %v670
        %v679 = vsel %vm639, %v657, %v671
        %v680 = vsel %vm640, %v659, %v672
        %v681 = vsel %vm641, %v661, %v673
        %v682 = vsel %vm642, %v663, %v674
        %v683 = vsel %vm643, %v665, %v675
        %v684 = vsel %vm644, %v667, %v676
        %v685 = vsel %vm645, %v669, %v677
        %v686 = vmul.f32 %v576, %v678
        %v687 = vmul.f32 %v579, %v679
        %v688 = vmul.f32 %v584, %v680
        %v689 = vmul.f32 %v587, %v681
        %v690 = vmul.f32 %v592, %v682
        %v691 = vmul.f32 %v595, %v683
        %v692 = vmul.f32 %v600, %v684
        %v693 = vmul.f32 %v603, %v685
        %vm694 = vcmask 523264
        %695 = vst.msk [vmem:[#allocation2] sm:$0xff] %vm694, 0.0
        %vm696 = vcmask 517120
        %697 = vst.msk [vmem:[#allocation2 + $0x8] sm:$0x3] %vm696, 0.0
        %s698 = scalar_lea.vmem [#allocation2], 144
        %699 = vst.msk [vmem:[%s698] sm:$0xff] %vm694, 0.0
        %700 = vst.msk [vmem:[%s698 + $0x8] sm:$0x3] %vm696, 0.0
        %vm701 = vcmask 516096
        %702 = vst.msk [vmem:[#allocation2] sm:$0x1] %vm701, 0.0
        %703 = vst.msk [vmem:[#allocation2 + $0x10] sm:$0x1] %vm701, 0.0
        %704 = vst.msk [vmem:[#allocation2 + $0x20] sm:$0x1] %vm701, 0.0
        %705 = vst.msk [vmem:[#allocation2 + $0x30] sm:$0x1] %vm701, 0.0
        %706 = vst.msk [vmem:[#allocation2 + $0x40] sm:$0x1] %vm701, 0.0
        %707 = vst.msk [vmem:[#allocation2 + $0x50] sm:$0x1] %vm701, 0.0
        %708 = vst.msk [vmem:[#allocation2 + $0x60] sm:$0x1] %vm701, 0.0
        %709 = vst.msk [vmem:[#allocation2 + $0x70] sm:$0x1] %vm701, 0.0
        %710 = vst.msk [vmem:[#allocation2 + $0x80] sm:$0x1] %vm701, 0.0
        %711 = vst.msk [vmem:[#allocation2 + $0x90] sm:$0x1] %vm701, 0.0
        %712 = vst.msk [vmem:[#allocation2 + $0x9] sm:$0x1] %vm701, 0.0
        %713 = vst.msk [vmem:[#allocation2 + $0x19] sm:$0x1] %vm701, 0.0
        %714 = vst.msk [vmem:[#allocation2 + $0x29] sm:$0x1] %vm701, 0.0
        %715 = vst.msk [vmem:[#allocation2 + $0x39] sm:$0x1] %vm701, 0.0
        %716 = vst.msk [vmem:[#allocation2 + $0x49] sm:$0x1] %vm701, 0.0
        %717 = vst.msk [vmem:[#allocation2 + $0x59] sm:$0x1] %vm701, 0.0
        %718 = vst.msk [vmem:[#allocation2 + $0x69] sm:$0x1] %vm701, 0.0
        %719 = vst.msk [vmem:[#allocation2 + $0x79] sm:$0x1] %vm701, 0.0
        %720 = vst.msk [vmem:[#allocation2 + $0x89] sm:$0x1] %vm701, 0.0
        %721 = vst.msk [vmem:[#allocation2 + $0x99] sm:$0x1] %vm701, 0.0
        %s722 = scalar_lea.vmem [#allocation2], 16
        %723 = vst.msk [vmem:[%s722 + $0x1] sm:$0xff] %vm694, %v576
        %724 = vst.msk [vmem:[%s722 + $0x11] sm:$0xff] %vm694, %v579
        %725 = vst.msk [vmem:[%s722 + $0x21] sm:$0xff] %vm694, %v584
        %726 = vst.msk [vmem:[%s722 + $0x31] sm:$0xff] %vm694, %v587
        %727 = vst.msk [vmem:[%s722 + $0x41] sm:$0xff] %vm694, %v592
        %728 = vst.msk [vmem:[%s722 + $0x51] sm:$0xff] %vm694, %v595
        %729 = vst.msk [vmem:[%s722 + $0x61] sm:$0xff] %vm694, %v600
        %730 = vst.msk [vmem:[%s722 + $0x71] sm:$0xff] %vm694, %v603
        %v731 = vld [vmem:[#allocation2] sm:$0xff]
        %v732 = vld [vmem:[#allocation2 + $0x10] sm:$0xff]
        %v733 = vld [vmem:[#allocation2 + $0x20] sm:$0xff]
        %v734 = vld [vmem:[#allocation2 + $0x30] sm:$0xff]
        %v735 = vld [vmem:[#allocation2 + $0x40] sm:$0xff]
        %v736 = vld [vmem:[#allocation2 + $0x50] sm:$0xff]
        %v737 = vld [vmem:[#allocation2 + $0x60] sm:$0xff]
        %v738 = vld [vmem:[#allocation2 + $0x70] sm:$0xff]
        %v739 = vld [vmem:[#allocation8] sm:$0x1]
        %v740 = vlaneseq
        %v741 = vshrl.u32 %v740, 7
        %v742 = vsub.s32 0, %v741
        %v743 = vrot.slane %v739, %v742
        %v744 = vmul.f32 %v731, %v743
        %v745 = vmul.f32 %v732, %v743
        %v746 = vmul.f32 %v733, %v743
        %v747 = vmul.f32 %v734, %v743
        %v748 = vmul.f32 %v735, %v743
        %v749 = vmul.f32 %v736, %v743
        %v750 = vmul.f32 %v737, %v743
        %v751 = vmul.f32 %v738, %v743
        %v752 = vadd.f32 %v744, 0.0
        %v753 = vadd.f32 %v745, 0.0
        %v754 = vadd.f32 %v746, 0.0
        %v755 = vadd.f32 %v747, 0.0
        %v756 = vadd.f32 %v748, 0.0
        %v757 = vadd.f32 %v749, 0.0
        %v758 = vadd.f32 %v750, 0.0
        %v759 = vadd.f32 %v751, 0.0
        %v760 = vld [vmem:[#allocation2 + $0x1] sm:$0xff]
        %v761 = vld [vmem:[#allocation2 + $0x11] sm:$0xff]
        %v762 = vld [vmem:[#allocation2 + $0x21] sm:$0xff]
        %v763 = vld [vmem:[#allocation2 + $0x31] sm:$0xff]
        %v764 = vld [vmem:[#allocation2 + $0x41] sm:$0xff]
        %v765 = vld [vmem:[#allocation2 + $0x51] sm:$0xff]
        %v766 = vld [vmem:[#allocation2 + $0x61] sm:$0xff]
        %v767 = vld [vmem:[#allocation2 + $0x71] sm:$0xff]
        %v768 = vld [vmem:[#allocation8 + $0x1] sm:$0x1]
        %v769 = vlaneseq
        %v770 = vshrl.u32 %v769, 7
        %v771 = vsub.s32 0, %v770
        %v772 = vrot.slane %v768, %v771
        %v773 = vmul.f32 %v760, %v772
        %v774 = vmul.f32 %v761, %v772
        %v775 = vmul.f32 %v762, %v772
        %v776 = vmul.f32 %v763, %v772
        %v777 = vmul.f32 %v764, %v772
        %v778 = vmul.f32 %v765, %v772
        %v779 = vmul.f32 %v766, %v772
        %v780 = vmul.f32 %v767, %v772
        %v781 = vadd.f32 %v752, %v773
        %v782 = vadd.f32 %v753, %v774
        %v783 = vadd.f32 %v754, %v775
        %v784 = vadd.f32 %v755, %v776
        %v785 = vadd.f32 %v756, %v777
        %v786 = vadd.f32 %v757, %v778
        %v787 = vadd.f32 %v758, %v779
        %v788 = vadd.f32 %v759, %v780
        %v789 = vld [vmem:[#allocation2 + $0x2] sm:$0xff]
        %v790 = vld [vmem:[#allocation2 + $0x12] sm:$0xff]
        %v791 = vld [vmem:[#allocation2 + $0x22] sm:$0xff]
        %v792 = vld [vmem:[#allocation2 + $0x32] sm:$0xff]
        %v793 = vld [vmem:[#allocation2 + $0x42] sm:$0xff]
        %v794 = vld [vmem:[#allocation2 + $0x52] sm:$0xff]
        %v795 = vld [vmem:[#allocation2 + $0x62] sm:$0xff]
        %v796 = vld [vmem:[#allocation2 + $0x72] sm:$0xff]
        %v797 = vld [vmem:[#allocation8 + $0x2] sm:$0x1]
        %v798 = vlaneseq
        %v799 = vshrl.u32 %v798, 7
        %v800 = vsub.s32 0, %v799
        %v801 = vrot.slane %v797, %v800
        %v802 = vmul.f32 %v789, %v801
        %v803 = vmul.f32 %v790, %v801
        %v804 = vmul.f32 %v791, %v801
        %v805 = vmul.f32 %v792, %v801
        %v806 = vmul.f32 %v793, %v801
        %v807 = vmul.f32 %v794, %v801
        %v808 = vmul.f32 %v795, %v801
        %v809 = vmul.f32 %v796, %v801
        %v810 = vadd.f32 %v781, %v802
        %v811 = vadd.f32 %v782, %v803
        %v812 = vadd.f32 %v783, %v804
        %v813 = vadd.f32 %v784, %v805
        %v814 = vadd.f32 %v785, %v806
        %v815 = vadd.f32 %v786, %v807
        %v816 = vadd.f32 %v787, %v808
        %v817 = vadd.f32 %v788, %v809
        %v818 = vld [vmem:[%s722] sm:$0xff]
        %v819 = vld [vmem:[%s722 + $0x10] sm:$0xff]
        %v820 = vld [vmem:[%s722 + $0x20] sm:$0xff]
        %v821 = vld [vmem:[%s722 + $0x30] sm:$0xff]
        %v822 = vld [vmem:[%s722 + $0x40] sm:$0xff]
        %v823 = vld [vmem:[%s722 + $0x50] sm:$0xff]
        %v824 = vld [vmem:[%s722 + $0x60] sm:$0xff]
        %v825 = vld [vmem:[%s722 + $0x70] sm:$0xff]
        %v826 = vld [vmem:[#allocation8 + $0x3] sm:$0x1]
        %v827 = vlaneseq
        %v828 = vshrl.u32 %v827, 7
        %v829 = vsub.s32 0, %v828
        %v830 = vrot.slane %v826, %v829
        %v831 = vmul.f32 %v818, %v830
        %v832 = vmul.f32 %v819, %v830
        %v833 = vmul.f32 %v820, %v830
        %v834 = vmul.f32 %v821, %v830
        %v835 = vmul.f32 %v822, %v830
        %v836 = vmul.f32 %v823, %v830
        %v837 = vmul.f32 %v824, %v830
        %v838 = vmul.f32 %v825, %v830
        %v839 = vadd.f32 %v810, %v831
        %v840 = vadd.f32 %v811, %v832
        %v841 = vadd.f32 %v812, %v833
        %v842 = vadd.f32 %v813, %v834
        %v843 = vadd.f32 %v814, %v835
        %v844 = vadd.f32 %v815, %v836
        %v845 = vadd.f32 %v816, %v837
        %v846 = vadd.f32 %v817, %v838
        %v847 = vld [vmem:[%s722 + $0x1] sm:$0xff]
        %v848 = vld [vmem:[%s722 + $0x11] sm:$0xff]
        %v849 = vld [vmem:[%s722 + $0x21] sm:$0xff]
        %v850 = vld [vmem:[%s722 + $0x31] sm:$0xff]
        %v851 = vld [vmem:[%s722 + $0x41] sm:$0xff]
        %v852 = vld [vmem:[%s722 + $0x51] sm:$0xff]
        %v853 = vld [vmem:[%s722 + $0x61] sm:$0xff]
        %v854 = vld [vmem:[%s722 + $0x71] sm:$0xff]
        %v855 = vld [vmem:[#allocation8 + $0x4] sm:$0x1]
        %v856 = vlaneseq
        %v857 = vshrl.u32 %v856, 7
        %v858 = vsub.s32 0, %v857
        %v859 = vrot.slane %v855, %v858
        %v860 = vmul.f32 %v847, %v859
        %v861 = vmul.f32 %v848, %v859
        %v862 = vmul.f32 %v849, %v859
        %v863 = vmul.f32 %v850, %v859
        %v864 = vmul.f32 %v851, %v859
        %v865 = vmul.f32 %v852, %v859
        %v866 = vmul.f32 %v853, %v859
        %v867 = vmul.f32 %v854, %v859
        %v868 = vadd.f32 %v839, %v860
        %v869 = vadd.f32 %v840, %v861
        %v870 = vadd.f32 %v841, %v862
        %v871 = vadd.f32 %v842, %v863
        %v872 = vadd.f32 %v843, %v864
        %v873 = vadd.f32 %v844, %v865
        %v874 = vadd.f32 %v845, %v866
        %v875 = vadd.f32 %v846, %v867
        %v876 = vld [vmem:[%s722 + $0x2] sm:$0xff]
        %v877 = vld [vmem:[%s722 + $0x12] sm:$0xff]
        %v878 = vld [vmem:[%s722 + $0x22] sm:$0xff]
        %v879 = vld [vmem:[%s722 + $0x32] sm:$0xff]
        %v880 = vld [vmem:[%s722 + $0x42] sm:$0xff]
        %v881 = vld [vmem:[%s722 + $0x52] sm:$0xff]
        %v882 = vld [vmem:[%s722 + $0x62] sm:$0xff]
        %v883 = vld [vmem:[%s722 + $0x72] sm:$0xff]
        %v884 = vld [vmem:[#allocation8 + $0x5] sm:$0x1]
        %v885 = vlaneseq
        %v886 = vshrl.u32 %v885, 7
        %v887 = vsub.s32 0, %v886
        %v888 = vrot.slane %v884, %v887
        %v889 = vmul.f32 %v876, %v888
        %v890 = vmul.f32 %v877, %v888
        %v891 = vmul.f32 %v878, %v888
        %v892 = vmul.f32 %v879, %v888
        %v893 = vmul.f32 %v880, %v888
        %v894 = vmul.f32 %v881, %v888
        %v895 = vmul.f32 %v882, %v888
        %v896 = vmul.f32 %v883, %v888
        %v897 = vadd.f32 %v868, %v889
        %v898 = vadd.f32 %v869, %v890
        %v899 = vadd.f32 %v870, %v891
        %v900 = vadd.f32 %v871, %v892
        %v901 = vadd.f32 %v872, %v893
        %v902 = vadd.f32 %v873, %v894
        %v903 = vadd.f32 %v874, %v895
        %v904 = vadd.f32 %v875, %v896
        %s905 = scalar_lea.vmem [#allocation2], 32
        %v906 = vld [vmem:[%s905] sm:$0xff]
        %v907 = vld [vmem:[%s905 + $0x10] sm:$0xff]
        %v908 = vld [vmem:[%s905 + $0x20] sm:$0xff]
        %v909 = vld [vmem:[%s905 + $0x30] sm:$0xff]
        %v910 = vld [vmem:[%s905 + $0x40] sm:$0xff]
        %v911 = vld [vmem:[%s905 + $0x50] sm:$0xff]
        %v912 = vld [vmem:[%s905 + $0x60] sm:$0xff]
        %v913 = vld [vmem:[%s905 + $0x70] sm:$0xff]
        %v914 = vld [vmem:[#allocation8 + $0x6] sm:$0x1]
        %v915 = vlaneseq
        %v916 = vshrl.u32 %v915, 7
        %v917 = vsub.s32 0, %v916
        %v918 = vrot.slane %v914, %v917
        %v919 = vmul.f32 %v906, %v918
        %v920 = vmul.f32 %v907, %v918
        %v921 = vmul.f32 %v908, %v918
        %v922 = vmul.f32 %v909, %v918
        %v923 = vmul.f32 %v910, %v918
        %v924 = vmul.f32 %v911, %v918
        %v925 = vmul.f32 %v912, %v918
        %v926 = vmul.f32 %v913, %v918
        %v927 = vadd.f32 %v897, %v919
        %v928 = vadd.f32 %v898, %v920
        %v929 = vadd.f32 %v899, %v921
        %v930 = vadd.f32 %v900, %v922
        %v931 = vadd.f32 %v901, %v923
        %v932 = vadd.f32 %v902, %v924
        %v933 = vadd.f32 %v903, %v925
        %v934 = vadd.f32 %v904, %v926
        %v935 = vld [vmem:[%s905 + $0x1] sm:$0xff]
        %v936 = vld [vmem:[%s905 + $0x11] sm:$0xff]
        %v937 = vld [vmem:[%s905 + $0x21] sm:$0xff]
        %v938 = vld [vmem:[%s905 + $0x31] sm:$0xff]
        %v939 = vld [vmem:[%s905 + $0x41] sm:$0xff]
        %v940 = vld [vmem:[%s905 + $0x51] sm:$0xff]
        %v941 = vld [vmem:[%s905 + $0x61] sm:$0xff]
        %v942 = vld [vmem:[%s905 + $0x71] sm:$0xff]
        %v943 = vld [vmem:[#allocation8 + $0x7] sm:$0x1]
        %v944 = vlaneseq
        %v945 = vshrl.u32 %v944, 7
        %v946 = vsub.s32 0, %v945
        %v947 = vrot.slane %v943, %v946
        %v948 = vmul.f32 %v935, %v947
        %v949 = vmul.f32 %v936, %v947
        %v950 = vmul.f32 %v937, %v947
        %v951 = vmul.f32 %v938, %v947
        %v952 = vmul.f32 %v939, %v947
        %v953 = vmul.f32 %v940, %v947
        %v954 = vmul.f32 %v941, %v947
        %v955 = vmul.f32 %v942, %v947
        %v956 = vadd.f32 %v927, %v948
        %v957 = vadd.f32 %v928, %v949
        %v958 = vadd.f32 %v929, %v950
        %v959 = vadd.f32 %v930, %v951
        %v960 = vadd.f32 %v931, %v952
        %v961 = vadd.f32 %v932, %v953
        %v962 = vadd.f32 %v933, %v954
        %v963 = vadd.f32 %v934, %v955
        %v964 = vld [vmem:[%s905 + $0x2] sm:$0xff]
        %v965 = vld [vmem:[%s905 + $0x12] sm:$0xff]
        %v966 = vld [vmem:[%s905 + $0x22] sm:$0xff]
        %v967 = vld [vmem:[%s905 + $0x32] sm:$0xff]
        %v968 = vld [vmem:[%s905 + $0x42] sm:$0xff]
        %v969 = vld [vmem:[%s905 + $0x52] sm:$0xff]
        %v970 = vld [vmem:[%s905 + $0x62] sm:$0xff]
        %v971 = vld [vmem:[%s905 + $0x72] sm:$0xff]
        %v972 = vld [vmem:[#allocation8 + $0x8] sm:$0x1]
        %v973 = vlaneseq
        %v974 = vshrl.u32 %v973, 7
        %v975 = vsub.s32 0, %v974
        %v976 = vrot.slane %v972, %v975
        %v977 = vmul.f32 %v964, %v976
        %v978 = vmul.f32 %v965, %v976
        %v979 = vmul.f32 %v966, %v976
        %v980 = vmul.f32 %v967, %v976
        %v981 = vmul.f32 %v968, %v976
        %v982 = vmul.f32 %v969, %v976
        %v983 = vmul.f32 %v970, %v976
        %v984 = vmul.f32 %v971, %v976
        %v985 = vadd.f32 %v956, %v977
        %v986 = vadd.f32 %v957, %v978
        %v987 = vadd.f32 %v958, %v979
        %v988 = vadd.f32 %v959, %v980
        %v989 = vadd.f32 %v960, %v981
        %v990 = vadd.f32 %v961, %v982
        %v991 = vadd.f32 %v962, %v983
        %v992 = vadd.f32 %v963, %v984
        %v993 = vld [vmem:[%s3] sm:$0x1]
        %v995 = vlaneseq
        %v996 = vshrl.u32 %v995, 7
        %v997 = vsub.s32 0, %v996
        %v998 = vrot.slane %v993, %v997
        %v1000 = vadd.f32 %v985, %v998
        %v1001 = vadd.f32 %v986, %v998
        %v1002 = vadd.f32 %v987, %v998
        %v1003 = vadd.f32 %v988, %v998
        %v1004 = vadd.f32 %v989, %v998
        %v1005 = vadd.f32 %v990, %v998
        %v1006 = vadd.f32 %v991, %v998
        %v1007 = vadd.f32 %v992, %v998
        %v1008 = vand.u32 2147483647, %v1000
        %v1009 = vand.u32 2147483647, %v1001
        %v1010 = vand.u32 2147483647, %v1002
        %v1011 = vand.u32 2147483647, %v1003
        %v1012 = vand.u32 2147483647, %v1004
        %v1013 = vand.u32 2147483647, %v1005
        %v1014 = vand.u32 2147483647, %v1006
        %v1015 = vand.u32 2147483647, %v1007
        %v1016 = vsub.f32 0.0, %v1008
        %v1017 = vsub.f32 0.0, %v1009
        %v1018 = vsub.f32 0.0, %v1010
        %v1019 = vsub.f32 0.0, %v1011
        %v1020 = vsub.f32 0.0, %v1012
        %v1021 = vsub.f32 0.0, %v1013
        %v1022 = vsub.f32 0.0, %v1014
        %v1023 = vsub.f32 0.0, %v1015
        %v1024 = vmul.f32 %v1016, 1.442695
        %v1025 = vpow.pop %v1024
        %v1026 = vmul.f32 %v1017, 1.442695
        %v1027 = vpow.pop %v1026
        %v1028 = vmul.f32 %v1018, 1.442695
        %v1029 = vpow.pop %v1028
        %v1030 = vmul.f32 %v1019, 1.442695
        %v1031 = vpow.pop %v1030
        %v1032 = vmul.f32 %v1020, 1.442695
        %v1033 = vpow.pop %v1032
        %v1034 = vmul.f32 %v1021, 1.442695
        %v1035 = vpow.pop %v1034
        %v1036 = vmul.f32 %v1022, 1.442695
        %v1037 = vpow.pop %v1036
        %v1038 = vmul.f32 %v1023, 1.442695
        %v1039 = vpow.pop %v1038
        %vm1040 = vcmp.ge.f32.partialorder %v1000, 0.0
        %vm1041 = vcmp.ge.f32.partialorder %v1001, 0.0
        %vm1042 = vcmp.ge.f32.partialorder %v1002, 0.0
        %vm1043 = vcmp.ge.f32.partialorder %v1003, 0.0
        %vm1044 = vcmp.ge.f32.partialorder %v1004, 0.0
        %vm1045 = vcmp.ge.f32.partialorder %v1005, 0.0
        %vm1046 = vcmp.ge.f32.partialorder %v1006, 0.0
        %vm1047 = vcmp.ge.f32.partialorder %v1007, 0.0
        %v1048 = vadd.f32 %v1025, 1.0
        %v1049 = vadd.f32 %v1027, 1.0
        %v1050 = vadd.f32 %v1029, 1.0
        %v1051 = vadd.f32 %v1031, 1.0
        %v1052 = vadd.f32 %v1033, 1.0
        %v1053 = vadd.f32 %v1035, 1.0
        %v1054 = vadd.f32 %v1037, 1.0
        %v1055 = vadd.f32 %v1039, 1.0
        %v1056 = vrcp.pop %v1048
        %v1057 = vmul.f32 1.0, %v1056
        %v1058 = vrcp.pop %v1049
        %v1059 = vmul.f32 1.0, %v1058
        %v1060 = vrcp.pop %v1050
        %v1061 = vmul.f32 1.0, %v1060
        %v1062 = vrcp.pop %v1051
        %v1063 = vmul.f32 1.0, %v1062
        %v1064 = vrcp.pop %v1052
        %v1065 = vmul.f32 1.0, %v1064
        %v1066 = vrcp.pop %v1053
        %v1067 = vmul.f32 1.0, %v1066
        %v1068 = vrcp.pop %v1054
        %v1069 = vmul.f32 1.0, %v1068
        %v1070 = vrcp.pop %v1055
        %v1071 = vmul.f32 1.0, %v1070
        %v1072 = vmul.f32 %v1025, %v1056
        %v1073 = vmul.f32 %v1027, %v1058
        %v1074 = vmul.f32 %v1029, %v1060
        %v1075 = vmul.f32 %v1031, %v1062
        %v1076 = vmul.f32 %v1033, %v1064
        %v1077 = vmul.f32 %v1035, %v1066
        %v1078 = vmul.f32 %v1037, %v1068
        %v1079 = vmul.f32 %v1039, %v1070
        %v1080 = vsel %vm1040, %v1057, %v1072
        %v1081 = vsel %vm1041, %v1059, %v1073
        %v1082 = vsel %vm1042, %v1061, %v1074
        %v1083 = vsel %vm1043, %v1063, %v1075
        %v1084 = vsel %vm1044, %v1065, %v1076
        %v1085 = vsel %vm1045, %v1067, %v1077
        %v1086 = vsel %vm1046, %v1069, %v1078
        %v1087 = vsel %vm1047, %v1071, %v1079
        %v1088 = vmul.f32 %v1000, %v1080
        %v1089 = vmul.f32 %v1001, %v1081
        %v1090 = vmul.f32 %v1002, %v1082
        %v1091 = vmul.f32 %v1003, %v1083
        %v1092 = vmul.f32 %v1004, %v1084
        %v1093 = vmul.f32 %v1005, %v1085
        %v1094 = vmul.f32 %v1006, %v1086
        %v1095 = vmul.f32 %v1007, %v1087
        %v1096 = vmul.f32 %v1088, %v1088
        %v1097 = vmul.f32 %v1089, %v1089
        %v1098 = vmul.f32 %v1090, %v1090
        %v1099 = vmul.f32 %v1091, %v1091
        %v1100 = vmul.f32 %v1092, %v1092
        %v1101 = vmul.f32 %v1093, %v1093
        %v1102 = vmul.f32 %v1094, %v1094
        %v1103 = vsel %vm694, %v1096, 0.0
        %1104 = vadd.xlane.f32.xlu0 %v1103
        %v1105 = vpop.xlane.xlu0 %1104
        %v1106 = vsel %vm694, %v1097, 0.0
        %1107 = vadd.xlane.f32.xlu0 %v1106
        %v1108 = vpop.xlane.xlu0 %1107
        %v1109 = vsel %vm694, %v1098, 0.0
        %1110 = vadd.xlane.f32.xlu0 %v1109
        %v1111 = vpop.xlane.xlu0 %1110
        %v1112 = vsel %vm694, %v1099, 0.0
        %1113 = vadd.xlane.f32.xlu0 %v1112
        %v1114 = vpop.xlane.xlu0 %1113
        %v1115 = vsel %vm694, %v1100, 0.0
        %1116 = vadd.xlane.f32.xlu0 %v1115
        %v1117 = vpop.xlane.xlu0 %1116
        %v1118 = vsel %vm694, %v1101, 0.0
        %1119 = vadd.xlane.f32.xlu0 %v1118
        %v1120 = vpop.xlane.xlu0 %1119
        %v1121 = vsel %vm694, %v1102, 0.0
        %1122 = vadd.xlane.f32.xlu0 %v1121
        %v1123 = vpop.xlane.xlu0 %1122
        %v1124 = vrsqrt.pop %v1105
        %v1125 = vmul.f32 %v1105, %v1124
        %vm1126 = vcmp.eq.f32.partialorder %v1105, inf
        %v1127 = vsel %vm1126, %v1105, %v1125
        %vm1128 = vcmp.eq.f32.partialorder %v1105, 0.0
        %v1129 = vand.u32 %v1105, 2147483648
        %v1130 = vsel %vm1128, %v1129, %v1127
        %v1131 = vrsqrt.pop %v1108
        %v1132 = vmul.f32 %v1108, %v1131
        %vm1133 = vcmp.eq.f32.partialorder %v1108, inf
        %v1134 = vsel %vm1133, %v1108, %v1132
        %vm1135 = vcmp.eq.f32.partialorder %v1108, 0.0
        %v1136 = vand.u32 %v1108, 2147483648
        %v1137 = vsel %vm1135, %v1136, %v1134
        %v1138 = vrsqrt.pop %v1111
        %v1139 = vmul.f32 %v1111, %v1138
        %vm1140 = vcmp.eq.f32.partialorder %v1111, inf
        %v1141 = vsel %vm1140, %v1111, %v1139
        %vm1142 = vcmp.eq.f32.partialorder %v1111, 0.0
        %v1143 = vand.u32 %v1111, 2147483648
        %v1144 = vsel %vm1142, %v1143, %v1141
        %v1145 = vrsqrt.pop %v1114
        %v1146 = vmul.f32 %v1114, %v1145
        %vm1147 = vcmp.eq.f32.partialorder %v1114, inf
        %v1148 = vsel %vm1147, %v1114, %v1146
        %vm1149 = vcmp.eq.f32.partialorder %v1114, 0.0
        %v1150 = vand.u32 %v1114, 2147483648
        %v1151 = vsel %vm1149, %v1150, %v1148
        %v1152 = vrsqrt.pop %v1117
        %v1153 = vmul.f32 %v1117, %v1152
        %vm1154 = vcmp.eq.f32.partialorder %v1117, inf
        %v1155 = vsel %vm1154, %v1117, %v1153
        %vm1156 = vcmp.eq.f32.partialorder %v1117, 0.0
        %v1157 = vand.u32 %v1117, 2147483648
        %v1158 = vsel %vm1156, %v1157, %v1155
        %v1159 = vrsqrt.pop %v1120
        %v1160 = vmul.f32 %v1120, %v1159
        %vm1161 = vcmp.eq.f32.partialorder %v1120, inf
        %v1162 = vsel %vm1161, %v1120, %v1160
        %vm1163 = vcmp.eq.f32.partialorder %v1120, 0.0
        %v1164 = vand.u32 %v1120, 2147483648
        %v1165 = vsel %vm1163, %v1164, %v1162
        %v1166 = vrsqrt.pop %v1123
        %v1167 = vmul.f32 %v1123, %v1166
        %vm1168 = vcmp.eq.f32.partialorder %v1123, inf
        %v1169 = vsel %vm1168, %v1123, %v1167
        %vm1170 = vcmp.eq.f32.partialorder %v1123, 0.0
        %v1171 = vand.u32 %v1123, 2147483648
        %v1172 = vsel %vm1170, %v1171, %v1169
        %v1173 = vmax.f32 %v1130, 1e-08
        %v1174 = vmax.f32 %v1137, 1e-08
        %v1175 = vmax.f32 %v1144, 1e-08
        %v1176 = vmax.f32 %v1151, 1e-08
        %v1177 = vmax.f32 %v1158, 1e-08
        %v1178 = vmax.f32 %v1165, 1e-08
        %v1179 = vmax.f32 %v1172, 1e-08
        %v1180 = vmul.f32 %v1095, %v1095
        %v1181 = vsel %vm694, %v1180, 0.0
        %1182 = vadd.xlane.f32.xlu0 %v1181
        %v1183 = vpop.xlane.xlu0 %1182
        %v1184 = vrsqrt.pop %v1183
        %v1185 = vmul.f32 %v1183, %v1184
        %vm1186 = vcmp.eq.f32.partialorder %v1183, inf
        %v1187 = vsel %vm1186, %v1183, %v1185
        %vm1188 = vcmp.eq.f32.partialorder %v1183, 0.0
        %v1189 = vand.u32 %v1183, 2147483648
        %v1190 = vsel %vm1188, %v1189, %v1187
        %v1191 = vmax.f32 %v1190, 1e-08
        %v1192 = vmul.f32 %v1088, %v1089
        %v1193 = vmul.f32 %v1089, %v1090
        %v1194 = vmul.f32 %v1090, %v1091
        %v1195 = vmul.f32 %v1091, %v1092
        %v1196 = vmul.f32 %v1092, %v1093
        %v1197 = vmul.f32 %v1093, %v1094
        %v1198 = vmul.f32 %v1094, %v1095
        %v1199 = vsel %vm694, %v1192, 0.0
        %1200 = vadd.xlane.f32.xlu0 %v1199
        %v1201 = vpop.xlane.xlu0 %1200
        %v1202 = vsel %vm694, %v1193, 0.0
        %1203 = vadd.xlane.f32.xlu0 %v1202
        %v1204 = vpop.xlane.xlu0 %1203
        %v1205 = vsel %vm694, %v1194, 0.0
        %1206 = vadd.xlane.f32.xlu0 %v1205
        %v1207 = vpop.xlane.xlu0 %1206
        %v1208 = vsel %vm694, %v1195, 0.0
        %1209 = vadd.xlane.f32.xlu0 %v1208
        %v1210 = vpop.xlane.xlu0 %1209
        %v1211 = vsel %vm694, %v1196, 0.0
        %1212 = vadd.xlane.f32.xlu0 %v1211
        %v1213 = vpop.xlane.xlu0 %1212
        %v1214 = vsel %vm694, %v1197, 0.0
        %1215 = vadd.xlane.f32.xlu0 %v1214
        %v1216 = vpop.xlane.xlu0 %1215
        %v1217 = vsel %vm694, %v1198, 0.0
        %1218 = vadd.xlane.f32.xlu0 %v1217
        %v1219 = vpop.xlane.xlu0 %1218
        %v1220 = vmul.f32 %v1173, %v1174
        %v1221 = vmul.f32 %v1174, %v1175
        %v1222 = vmul.f32 %v1175, %v1176
        %v1223 = vmul.f32 %v1176, %v1177
        %v1224 = vmul.f32 %v1177, %v1178
        %v1225 = vmul.f32 %v1178, %v1179
        %v1226 = vmul.f32 %v1179, %v1191
        %v1227 = vrcp.pop %v1220
        %v1228 = vmul.f32 %v1201, %v1227
        %v1229 = vrcp.pop %v1221
        %v1230 = vmul.f32 %v1204, %v1229
        %v1231 = vrcp.pop %v1222
        %v1232 = vmul.f32 %v1207, %v1231
        %v1233 = vrcp.pop %v1223
        %v1234 = vmul.f32 %v1210, %v1233
        %v1235 = vrcp.pop %v1224
        %v1236 = vmul.f32 %v1213, %v1235
        %v1237 = vrcp.pop %v1225
        %v1238 = vmul.f32 %v1216, %v1237
        %v1239 = vrcp.pop %v1226
        %v1240 = vmul.f32 %v1219, %v1239
        %v1241 = vsub.f32 0.0, %v1228
        %v1242 = vsub.f32 0.0, %v1230
        %v1243 = vsub.f32 0.0, %v1232
        %v1244 = vsub.f32 0.0, %v1234
        %v1245 = vsub.f32 0.0, %v1236
        %v1246 = vsub.f32 0.0, %v1238
        %v1247 = vsub.f32 0.0, %v1240
        %v1248 = vmul.f32 %v1241, 1.442695
        %v1249 = vpow.pop %v1248
        %v1250 = vmul.f32 %v1242, 1.442695
        %v1251 = vpow.pop %v1250
        %v1252 = vmul.f32 %v1243, 1.442695
        %v1253 = vpow.pop %v1252
        %v1254 = vmul.f32 %v1244, 1.442695
        %v1255 = vpow.pop %v1254
        %v1256 = vmul.f32 %v1245, 1.442695
        %v1257 = vpow.pop %v1256
        %v1258 = vmul.f32 %v1246, 1.442695
        %v1259 = vpow.pop %v1258
        %v1260 = vmul.f32 %v1247, 1.442695
        %v1261 = vpow.pop %v1260
        %vm1262 = vcmask 7168
        %1263 = vst.msk [vmem:[%s493] sm:$0xff] %vm1262, %v1249
        %1264 = vst.msk [vmem:[%s493 + $0x8] sm:$0xff] %vm1262, %v1251
        %1265 = vst.msk [vmem:[%s493 + $0x10] sm:$0xff] %vm1262, %v1253
        %1266 = vst.msk [vmem:[%s493 + $0x18] sm:$0xff] %vm1262, %v1255
        %1267 = vst.msk [vmem:[%s493 + $0x20] sm:$0xff] %vm1262, %v1257
        %1268 = vst.msk [vmem:[%s493 + $0x28] sm:$0xff] %vm1262, %v1259
        %1269 = vst.msk [vmem:[%s493 + $0x30] sm:$0xff] %vm1262, %v1261
        %vm1270 = vcmask 522240
        %v1271 = vsel %vm1270, %v1180, 0.0
        %1272 = vadd.xlane.f32.xlu0 %v1271
        %v1273 = vpop.xlane.xlu0 %1272
        %v1274 = vrsqrt.pop %v1273
        %v1275 = vmul.f32 %v1273, %v1274
        %vm1276 = vcmp.eq.f32.partialorder %v1273, inf
        %v1277 = vsel %vm1276, %v1273, %v1275
        %vm1278 = vcmp.eq.f32.partialorder %v1273, 0.0
        %v1279 = vand.u32 %v1273, 2147483648
        %v1280 = vsel %vm1278, %v1279, %v1277
        %v1281 = vmax.f32 %v1280, 1e-08
        %vm1282 = vcmask 523265
        %v1283 = vsel %vm1282, %v1096, 0.0
        %1284 = vadd.xlane.f32.xlu0 %v1283
        %v1285 = vpop.xlane.xlu0 %1284
        %v1286 = vrsqrt.pop %v1285
        %v1287 = vmul.f32 %v1285, %v1286
        %vm1288 = vcmp.eq.f32.partialorder %v1285, inf
        %v1289 = vsel %vm1288, %v1285, %v1287
        %vm1290 = vcmp.eq.f32.partialorder %v1285, 0.0
        %v1291 = vand.u32 %v1285, 2147483648
        %v1292 = vsel %vm1290, %v1291, %v1289
        %v1293 = vmax.f32 %v1292, 1e-08
        %vm1302 = vcmask 1046528
        %v1303 = vrot.slane %v1088, 1
        %v1304 = vrot.slane %v1089, 1
        %v1305 = vsel %vm1302, %v1303, %v1304
        %v1306 = vrot.slane %v1090, 1
        %v1307 = vsel %vm1302, %v1304, %v1306
        %v1308 = vrot.slane %v1091, 1
        %v1309 = vsel %vm1302, %v1306, %v1308
        %v1310 = vrot.slane %v1092, 1
        %v1311 = vsel %vm1302, %v1308, %v1310
        %v1312 = vrot.slane %v1093, 1
        %v1313 = vsel %vm1302, %v1310, %v1312
        %v1314 = vrot.slane %v1094, 1
        %v1315 = vsel %vm1302, %v1312, %v1314
        %v1316 = vrot.slane %v1095, 1
        %v1317 = vsel %vm1302, %v1314, %v1316
        %v1326 = vmul.f32 %v1088, %v1305
        %v1327 = vmul.f32 %v1089, %v1307
        %v1328 = vmul.f32 %v1090, %v1309
        %v1329 = vmul.f32 %v1091, %v1311
        %v1330 = vmul.f32 %v1092, %v1313
        %v1331 = vmul.f32 %v1093, %v1315
        %v1332 = vmul.f32 %v1094, %v1317
        %v1333 = vmul.f32 %v1095, %v1316
        %v1334 = vsel %vm694, %v1326, 0.0
        %1335 = vadd.xlane.f32.xlu0 %v1334
        %v1336 = vpop.xlane.xlu0 %1335
        %v1337 = vsel %vm694, %v1327, 0.0
        %1338 = vadd.xlane.f32.xlu0 %v1337
        %v1339 = vpop.xlane.xlu0 %1338
        %v1340 = vsel %vm694, %v1328, 0.0
        %1341 = vadd.xlane.f32.xlu0 %v1340
        %v1342 = vpop.xlane.xlu0 %1341
        %v1343 = vsel %vm694, %v1329, 0.0
        %1344 = vadd.xlane.f32.xlu0 %v1343
        %v1345 = vpop.xlane.xlu0 %1344
        %v1346 = vsel %vm694, %v1330, 0.0
        %1347 = vadd.xlane.f32.xlu0 %v1346
        %v1348 = vpop.xlane.xlu0 %1347
        %v1349 = vsel %vm694, %v1331, 0.0
        %1350 = vadd.xlane.f32.xlu0 %v1349
        %v1351 = vpop.xlane.xlu0 %1350
        %v1352 = vsel %vm694, %v1332, 0.0
        %1353 = vadd.xlane.f32.xlu0 %v1352
        %v1354 = vpop.xlane.xlu0 %1353
        %v1355 = vsel %vm1270, %v1333, 0.0
        %1356 = vadd.xlane.f32.xlu0 %v1355
        %v1357 = vpop.xlane.xlu0 %1356
        %v1366 = vrot.slane %v1293, 1
        %v1367 = vrot.slane %v1174, 1
        %v1368 = vsel %vm1302, %v1366, %v1367
        %v1369 = vrot.slane %v1175, 1
        %v1370 = vsel %vm1302, %v1367, %v1369
        %v1371 = vrot.slane %v1176, 1
        %v1372 = vsel %vm1302, %v1369, %v1371
        %v1373 = vrot.slane %v1177, 1
        %v1374 = vsel %vm1302, %v1371, %v1373
        %v1375 = vrot.slane %v1178, 1
        %v1376 = vsel %vm1302, %v1373, %v1375
        %v1377 = vrot.slane %v1179, 1
        %v1378 = vsel %vm1302, %v1375, %v1377
        %v1379 = vrot.slane %v1191, 1
        %v1380 = vsel %vm1302, %v1377, %v1379
        %v1389 = vmul.f32 %v1173, %v1368
        %v1390 = vmul.f32 %v1174, %v1370
        %v1391 = vmul.f32 %v1175, %v1372
        %v1392 = vmul.f32 %v1176, %v1374
        %v1393 = vmul.f32 %v1177, %v1376
        %v1394 = vmul.f32 %v1178, %v1378
        %v1395 = vmul.f32 %v1179, %v1380
        %v1396 = vmul.f32 %v1281, %v1379
        %v1397 = vrcp.pop %v1389
        %v1398 = vmul.f32 %v1336, %v1397
        %v1399 = vrcp.pop %v1390
        %v1400 = vmul.f32 %v1339, %v1399
        %v1401 = vrcp.pop %v1391
        %v1402 = vmul.f32 %v1342, %v1401
        %v1403 = vrcp.pop %v1392
        %v1404 = vmul.f32 %v1345, %v1403
        %v1405 = vrcp.pop %v1393
        %v1406 = vmul.f32 %v1348, %v1405
        %v1407 = vrcp.pop %v1394
        %v1408 = vmul.f32 %v1351, %v1407
        %v1409 = vrcp.pop %v1395
        %v1410 = vmul.f32 %v1354, %v1409
        %v1411 = vrcp.pop %v1396
        %v1412 = vmul.f32 %v1357, %v1411
        %v1413 = vsub.f32 0.0, %v1398
        %v1414 = vsub.f32 0.0, %v1400
        %v1415 = vsub.f32 0.0, %v1402
        %v1416 = vsub.f32 0.0, %v1404
        %v1417 = vsub.f32 0.0, %v1406
        %v1418 = vsub.f32 0.0, %v1408
        %v1419 = vsub.f32 0.0, %v1410
        %v1420 = vsub.f32 0.0, %v1412
        %v1421 = vmul.f32 %v1413, 1.442695
        %v1422 = vpow.pop %v1421
        %v1423 = vmul.f32 %v1414, 1.442695
        %v1424 = vpow.pop %v1423
        %v1425 = vmul.f32 %v1415, 1.442695
        %v1426 = vpow.pop %v1425
        %v1427 = vmul.f32 %v1416, 1.442695
        %v1428 = vpow.pop %v1427
        %v1429 = vmul.f32 %v1417, 1.442695
        %v1430 = vpow.pop %v1429
        %v1431 = vmul.f32 %v1418, 1.442695
        %v1432 = vpow.pop %v1431
        %v1433 = vmul.f32 %v1419, 1.442695
        %v1434 = vpow.pop %v1433
        %v1435 = vmul.f32 %v1420, 1.442695
        %v1436 = vpow.pop %v1435
        %1437 = vst.msk [vmem:[%s498] sm:$0xff] %vm1262, %v1422
        %1438 = vst.msk [vmem:[%s498 + $0x8] sm:$0xff] %vm1262, %v1424
        %1439 = vst.msk [vmem:[%s498 + $0x10] sm:$0xff] %vm1262, %v1426
        %1440 = vst.msk [vmem:[%s498 + $0x18] sm:$0xff] %vm1262, %v1428
        %1441 = vst.msk [vmem:[%s498 + $0x20] sm:$0xff] %vm1262, %v1430
        %1442 = vst.msk [vmem:[%s498 + $0x28] sm:$0xff] %vm1262, %v1432
        %1443 = vst.msk [vmem:[%s498 + $0x30] sm:$0xff] %vm1262, %v1434
        %vm1444 = vcmask 6144
        %1445 = vst.msk [vmem:[%s498 + $0x38] sm:$0x7f] %vm1444, %v1436
        %v1446 = vpack.c.bf16 %v1089, %v1088
        %v1447 = vpack.c.bf16 %v1091, %v1090
        %v1448 = vpack.c.bf16 %v1093, %v1092
        %v1449 = vpack.c.bf16 %v1095, %v1094
        %v1450 = vld [vmem:[#allocation9] sm:$0xf]
        %v1451 = vld [vmem:[#allocation9 + $0x4] sm:$0xf]
        %v1452 = vld [vmem:[#allocation9 + $0x8] sm:$0xf]
        %v1453 = vld [vmem:[#allocation9 + $0xc] sm:$0xf]
        %v1454 = vld [vmem:[#allocation9 + $0x10] sm:$0xf]
        %v1455 = vld [vmem:[#allocation9 + $0x14] sm:$0xf]
        %v1456 = vld [vmem:[#allocation9 + $0x18] sm:$0xf]
        %v1457 = vld [vmem:[#allocation9 + $0x1c] sm:$0xf]
        %v1466 = vunpack.c.l.b16 %v1450
        %v1467 = vunpack.c.l.b16 %v1451
        %v1468 = vunpack.c.l.b16 %v1452
        %v1469 = vunpack.c.l.b16 %v1453
        %v1470 = vunpack.c.l.b16 %v1454
        %v1471 = vunpack.c.l.b16 %v1455
        %v1472 = vunpack.c.l.b16 %v1456
        %v1473 = vunpack.c.l.b16 %v1457
        %v1474 = vpack.c.b16 %v1467, %v1466
        %v1475 = vpack.c.b16 %v1469, %v1468
        %v1476 = vpack.c.b16 %v1471, %v1470
        %v1477 = vpack.c.b16 %v1473, %v1472
        %v1483 = vsel %vm694, %v1446, 0
        %v1486 = vsel %vm694, %v1447, 0
        %v1489 = vsel %vm694, %v1448, 0
        %v1492 = vsel %vm694, %v1449, 0
        %1494 = vmatprep.subr.bf16.mxu0 0
        %1495 = vmatpush1.bf16.msra.mxu0 %v1474
        %1496 = vmatprep.subr.bf16.mxu0 0
        %1497 = vmatpush1.bf16.msra.mxu0 %v1475
        %1498 = vmatprep.subr.bf16.mxu0 0
        %1499 = vmatpush1.bf16.msra.mxu0 %v1476
        %1500 = vmatprep.subr.bf16.mxu0 0
        %1501 = vmatpush1.bf16.msra.mxu0 %v1477
        %1502 = vmatprep.subr.bf16.mxu0 0
        %1503 = vmatpush1.bf16.msra.mxu0 0
        %1504 = vmatprep.subr.bf16.mxu0 0
        %1505 = vmatpush1.bf16.msra.mxu0 0
        %1506 = vmatprep.subr.bf16.mxu0 0
        %1507 = vmatpush1.bf16.msra.mxu0 0
        %1508 = vmatprep.subr.bf16.mxu0 0
        %1509 = vmatpush1.bf16.msra.mxu0 0
        %1510 = vmatprep.subr.bf16.mxu0 0
        %1511 = vmatpush1.bf16.msra.mxu0 0
        %1512 = vmatprep.subr.bf16.mxu0 0
        %1513 = vmatpush1.bf16.msra.mxu0 0
        %1514 = vmatprep.subr.bf16.mxu0 0
        %1515 = vmatpush1.bf16.msra.mxu0 0
        %1516 = vmatprep.subr.bf16.mxu0 0
        %1517 = vmatpush1.bf16.msra.mxu0 0
        %1518 = vmatprep.subr.bf16.mxu0 0
        %1519 = vmatpush1.bf16.msra.mxu0 0
        %1520 = vmatprep.subr.bf16.mxu0 0
        %1521 = vmatpush1.bf16.msra.mxu0 0
        %1522 = vmatprep.subr.bf16.mxu0 0
        %1523 = vmatpush1.bf16.msra.mxu0 0
        %1524 = vmatprep.subr.bf16.mxu0 0
        %1525 = vmatpush1.bf16.msra.mxu0 0
        %1526 = vmatprep.mubr.bf16.mxu0 0
        %1527 = vmatmul.mubr.bf16.gmra.mrb[0].mxu0 %v1483
        %v1528 = vpop.f32.mrb[0].mxu0
        %v1529 = vadd.f32 0.0, %v1528
        %v1530 = vpop.f32.mrb[0].mxu0
        %v1531 = vpop.f32.mrb[0].mxu0
        %v1532 = vadd.f32 0.0, %v1531
        %v1533 = vpop.f32.mrb[0].mxu0
        %1534 = vmatprep.mubr.bf16.mxu0 0
        %1535 = vmatmul.mubr.bf16.gmra.mrb[0].mxu0 %v1486
        %v1536 = vpop.f32.mrb[0].mxu0
        %v1537 = vadd.f32 0.0, %v1536
        %v1538 = vpop.f32.mrb[0].mxu0
        %v1539 = vpop.f32.mrb[0].mxu0
        %v1540 = vadd.f32 0.0, %v1539
        %v1541 = vpop.f32.mrb[0].mxu0
        %1542 = vmatprep.mubr.bf16.mxu0 0
        %1543 = vmatmul.mubr.bf16.gmra.mrb[0].mxu0 %v1489
        %v1544 = vpop.f32.mrb[0].mxu0
        %v1545 = vadd.f32 0.0, %v1544
        %v1546 = vpop.f32.mrb[0].mxu0
        %v1547 = vpop.f32.mrb[0].mxu0
        %v1548 = vadd.f32 0.0, %v1547
        %v1549 = vpop.f32.mrb[0].mxu0
        %1550 = vmatprep.mubr.bf16.mxu0 0
        %1551 = vmatmul.mubr.bf16.gmra.mrb[0].mxu0 %v1492
        %v1552 = vpop.f32.mrb[0].mxu0
        %v1553 = vadd.f32 0.0, %v1552
        %v1554 = vpop.f32.mrb[0].mxu0
        %v1555 = vpop.f32.mrb[0].mxu0
        %v1556 = vadd.f32 0.0, %v1555
        %v1557 = vpop.f32.mrb[0].mxu0
        %1558 = vdwg.mxu0
        %v1559 = vld [vmem:[%s5] sm:$0x1]
        %v1561 = vlaneseq
        %v1562 = vshrl.u32 %v1561, 7
        %v1563 = vsub.s32 0, %v1562
        %v1564 = vrot.slane %v1559, %v1563
        %v1566 = vadd.f32 %v1529, %v1564
        %v1567 = vadd.f32 %v1532, %v1564
        %v1568 = vadd.f32 %v1537, %v1564
        %v1569 = vadd.f32 %v1540, %v1564
        %v1570 = vadd.f32 %v1545, %v1564
        %v1571 = vadd.f32 %v1548, %v1564
        %v1572 = vadd.f32 %v1553, %v1564
        %v1573 = vadd.f32 %v1556, %v1564
        %vm1574 = vcmp.gt.f32.partialorder %v1566, 20.0
        %vm1575 = vcmp.gt.f32.partialorder %v1567, 20.0
        %vm1576 = vcmp.gt.f32.partialorder %v1568, 20.0
        %vm1577 = vcmp.gt.f32.partialorder %v1569, 20.0
        %vm1578 = vcmp.gt.f32.partialorder %v1570, 20.0
        %vm1579 = vcmp.gt.f32.partialorder %v1571, 20.0
        %vm1580 = vcmp.gt.f32.partialorder %v1572, 20.0
        %vm1581 = vcmp.gt.f32.partialorder %v1573, 20.0
        %v1582 = vmin.f32 %v1566, 20.0
        %v1583 = vmin.f32 %v1567, 20.0
        %v1584 = vmin.f32 %v1568, 20.0
        %v1585 = vmin.f32 %v1569, 20.0
        %v1586 = vmin.f32 %v1570, 20.0
        %v1587 = vmin.f32 %v1571, 20.0
        %v1588 = vmin.f32 %v1572, 20.0
        %v1589 = vmin.f32 %v1573, 20.0
        %v1590 = vmul.f32 %v1582, 1.442695
        %v1591 = vpow.pop %v1590
        %v1592 = vmul.f32 %v1583, 1.442695
        %v1593 = vpow.pop %v1592
        %v1594 = vmul.f32 %v1584, 1.442695
        %v1595 = vpow.pop %v1594
        %v1596 = vmul.f32 %v1585, 1.442695
        %v1597 = vpow.pop %v1596
        %v1598 = vmul.f32 %v1586, 1.442695
        %v1599 = vpow.pop %v1598
        %v1600 = vmul.f32 %v1587, 1.442695
        %v1601 = vpow.pop %v1600
        %v1602 = vmul.f32 %v1588, 1.442695
        %v1603 = vpow.pop %v1602
        %v1604 = vmul.f32 %v1589, 1.442695
        %v1605 = vpow.pop %v1604
        %v1606 = vadd.f32 %v1591, 1.0
        %v1607 = vadd.f32 %v1593, 1.0
        %v1608 = vadd.f32 %v1595, 1.0
        %v1609 = vadd.f32 %v1597, 1.0
        %v1610 = vadd.f32 %v1599, 1.0
        %v1611 = vadd.f32 %v1601, 1.0
        %v1612 = vadd.f32 %v1603, 1.0
        %v1613 = vadd.f32 %v1605, 1.0
        %v1614 = vlog2.pop %v1606
        %v1615 = vmul.f32 %v1614, 0.6931472
        %v1616 = vlog2.pop %v1607
        %v1617 = vmul.f32 %v1616, 0.6931472
        %v1618 = vlog2.pop %v1608
        %v1619 = vmul.f32 %v1618, 0.6931472
        %v1620 = vlog2.pop %v1609
        %v1621 = vmul.f32 %v1620, 0.6931472
        %v1622 = vlog2.pop %v1610
        %v1623 = vmul.f32 %v1622, 0.6931472
        %v1624 = vlog2.pop %v1611
        %v1625 = vmul.f32 %v1624, 0.6931472
        %v1626 = vlog2.pop %v1612
        %v1627 = vmul.f32 %v1626, 0.6931472
        %v1628 = vlog2.pop %v1613
        %v1629 = vmul.f32 %v1628, 0.6931472
        %v1630 = vsel %vm1574, %v1566, %v1615
        %v1631 = vsel %vm1575, %v1567, %v1617
        %v1632 = vsel %vm1576, %v1568, %v1619
        %v1633 = vsel %vm1577, %v1569, %v1621
        %v1634 = vsel %vm1578, %v1570, %v1623
        %v1635 = vsel %vm1579, %v1571, %v1625
        %v1636 = vsel %vm1580, %v1572, %v1627
        %v1637 = vsel %vm1581, %v1573, %v1629
        %v1638 = vld [vmem:[%s6] sm:$0x1]
        %v1640 = vlaneseq
        %v1641 = vshrl.u32 %v1640, 7
        %v1642 = vsub.s32 0, %v1641
        %v1643 = vrot.slane %v1638, %v1642
        %v1645 = vmul.f32 %v1630, %v1643
        %v1646 = vmul.f32 %v1631, %v1643
        %v1647 = vmul.f32 %v1632, %v1643
        %v1648 = vmul.f32 %v1633, %v1643
        %v1649 = vmul.f32 %v1634, %v1643
        %v1650 = vmul.f32 %v1635, %v1643
        %v1651 = vmul.f32 %v1636, %v1643
        %v1652 = vmul.f32 %v1637, %v1643
        %v1653 = vmul.f32 %v1645, 1.442695
        %v1654 = vpow.pop %v1653
        %v1655 = vmul.f32 %v1646, 1.442695
        %v1656 = vpow.pop %v1655
        %v1657 = vmul.f32 %v1647, 1.442695
        %v1658 = vpow.pop %v1657
        %v1659 = vmul.f32 %v1648, 1.442695
        %v1660 = vpow.pop %v1659
        %v1661 = vmul.f32 %v1649, 1.442695
        %v1662 = vpow.pop %v1661
        %v1663 = vmul.f32 %v1650, 1.442695
        %v1664 = vpow.pop %v1663
        %v1665 = vmul.f32 %v1651, 1.442695
        %v1666 = vpow.pop %v1665
        %v1667 = vmul.f32 %v1652, 1.442695
        %v1668 = vpow.pop %v1667
        %1670 = vset.pattern.permute.xlu0 64
        %1671 = vperm.xlu0 %1670, %v1529
        %v1672 = vpop.permute.xlu0 %1671
        %1675 = vset.pattern.permute.xlu0 64
        %1676 = vperm.xlu0 %1675, %v1532
        %v1677 = vpop.permute.xlu0 %1676
        %1680 = vset.pattern.permute.xlu0 64
        %1681 = vperm.xlu0 %1680, %v1537
        %v1682 = vpop.permute.xlu0 %1681
        %1685 = vset.pattern.permute.xlu0 64
        %1686 = vperm.xlu0 %1685, %v1540
        %v1687 = vpop.permute.xlu0 %1686
        %1690 = vset.pattern.permute.xlu0 64
        %1691 = vperm.xlu0 %1690, %v1545
        %v1692 = vpop.permute.xlu0 %1691
        %1695 = vset.pattern.permute.xlu0 64
        %1696 = vperm.xlu0 %1695, %v1548
        %v1697 = vpop.permute.xlu0 %1696
        %1700 = vset.pattern.permute.xlu0 64
        %1701 = vperm.xlu0 %1700, %v1553
        %v1702 = vpop.permute.xlu0 %1701
        %1705 = vset.pattern.permute.xlu0 64
        %1706 = vperm.xlu0 %1705, %v1556
        %v1707 = vpop.permute.xlu0 %1706
        %v1709 = vmul.f32 %v1630, %v1672
        %v1710 = vmul.f32 %v1631, %v1677
        %v1711 = vmul.f32 %v1632, %v1682
        %v1712 = vmul.f32 %v1633, %v1687
        %v1713 = vmul.f32 %v1634, %v1692
        %v1714 = vmul.f32 %v1635, %v1697
        %v1715 = vmul.f32 %v1636, %v1702
        %v1716 = vmul.f32 %v1637, %v1707
        %v1717 = vmul.f32 %v1709, %v1088
        %v1718 = vmul.f32 %v1710, %v1089
        %v1719 = vmul.f32 %v1711, %v1090
        %v1720 = vmul.f32 %v1712, %v1091
        %v1721 = vmul.f32 %v1713, %v1092
        %v1722 = vmul.f32 %v1714, %v1093
        %v1723 = vmul.f32 %v1715, %v1094
        %v1724 = vmul.f32 %v1716, %v1095
        %v1725 = vsel %vm694, %v1088, %v686
        %v1726 = vsel %vm694, %v1089, %v687
        %v1727 = vsel %vm694, %v1090, %v688
        %v1728 = vsel %vm694, %v1091, %v689
        %v1729 = vsel %vm694, %v1092, %v690
        %v1730 = vsel %vm694, %v1093, %v691
        %v1731 = vsel %vm694, %v1094, %v692
        %v1732 = vsel %vm694, %v1095, %v693
        %v1733 = vpack.c.bf16 %v1726, %v1725
        %v1734 = vpack.c.bf16 %v1728, %v1727
        %v1735 = vpack.c.bf16 %v1730, %v1729
        %v1736 = vpack.c.bf16 %v1732, %v1731
        %v1741 = vunpack.c.l.b16 %v1733
        %v1742 = vunpack.c.h.b16 %v1733
        %v1743 = vunpack.c.l.b16 %v1734
        %v1744 = vunpack.c.h.b16 %v1734
        %v1745 = vunpack.c.l.b16 %v1735
        %v1746 = vunpack.c.h.b16 %v1735
        %v1747 = vunpack.c.l.b16 %v1736
        %v1748 = vunpack.c.h.b16 %v1736
        %v1749 = vpack.c.b16 %v1741, %v1741
        %v1750 = vpack.c.b16 %v1742, %v1742
        %v1751 = vpack.c.b16 %v1743, %v1743
        %v1752 = vpack.c.b16 %v1744, %v1744
        %v1753 = vpack.c.b16 %v1745, %v1745
        %v1754 = vpack.c.b16 %v1746, %v1746
        %v1755 = vpack.c.b16 %v1747, %v1747
        %v1756 = vpack.c.b16 %v1748, %v1748
        %1765 = vst [vmem:[%s452] sm:$0xf] %v1749
        %1766 = vst [vmem:[%s452 + $0x4] sm:$0xf] %v1750
        %1767 = vst [vmem:[%s452 + $0x8] sm:$0xf] %v1751
        %1768 = vst [vmem:[%s452 + $0xc] sm:$0xf] %v1752
        %1769 = vst [vmem:[%s452 + $0x10] sm:$0xf] %v1753
        %1770 = vst [vmem:[%s452 + $0x14] sm:$0xf] %v1754
        %1771 = vst [vmem:[%s452 + $0x18] sm:$0xf] %v1755
        %1772 = vst [vmem:[%s452 + $0x1c] sm:$0xf] %v1756
        %1781 = vrot.lane.b32.xlu0 %v1717, 64
        %v1782 = vpop.permute.xlu0 %1781
        %1783 = vrot.lane.b32.xlu0 %v1718, 64
        %v1784 = vpop.permute.xlu0 %1783
        %1785 = vrot.lane.b32.xlu0 %v1719, 64
        %v1786 = vpop.permute.xlu0 %1785
        %1787 = vrot.lane.b32.xlu0 %v1720, 64
        %v1788 = vpop.permute.xlu0 %1787
        %1789 = vrot.lane.b32.xlu0 %v1721, 64
        %v1790 = vpop.permute.xlu0 %1789
        %1791 = vrot.lane.b32.xlu0 %v1722, 64
        %v1792 = vpop.permute.xlu0 %1791
        %1793 = vrot.lane.b32.xlu0 %v1723, 64
        %v1794 = vpop.permute.xlu0 %1793
        %1795 = vrot.lane.b32.xlu0 %v1724, 64
        %v1796 = vpop.permute.xlu0 %1795
        %v1805 = vsel %vm694, %v1654, %v1782
        %v1806 = vsel %vm694, %v1656, %v1784
        %v1807 = vsel %vm694, %v1658, %v1786
        %v1808 = vsel %vm694, %v1660, %v1788
        %v1809 = vsel %vm694, %v1662, %v1790
        %v1810 = vsel %vm694, %v1664, %v1792
        %v1811 = vsel %vm694, %v1666, %v1794
        %v1812 = vsel %vm694, %v1668, %v1796
        %1813 = vst [vmem:[%s459] sm:$0xff] %v1805
        %1814 = vst [vmem:[%s459 + $0x8] sm:$0xff] %v1806
        %1815 = vst [vmem:[%s459 + $0x10] sm:$0xff] %v1807
        %1816 = vst [vmem:[%s459 + $0x18] sm:$0xff] %v1808
        %1817 = vst [vmem:[%s459 + $0x20] sm:$0xff] %v1809
        %1818 = vst [vmem:[%s459 + $0x28] sm:$0xff] %v1810
        %1819 = vst [vmem:[%s459 + $0x30] sm:$0xff] %v1811
        %1820 = vst [vmem:[%s459 + $0x38] sm:$0xff] %v1812
        %1821 = vrot.lane.b32.xlu0 %v1529, 63
        %v1822 = vpop.permute.xlu0 %1821
        %1823 = vrot.lane.b32.xlu0 %v1532, 63
        %v1824 = vpop.permute.xlu0 %1823
        %1825 = vrot.lane.b32.xlu0 %v1537, 63
        %v1826 = vpop.permute.xlu0 %1825
        %1827 = vrot.lane.b32.xlu0 %v1540, 63
        %v1828 = vpop.permute.xlu0 %1827
        %1829 = vrot.lane.b32.xlu0 %v1545, 63
        %v1830 = vpop.permute.xlu0 %1829
        %1831 = vrot.lane.b32.xlu0 %v1548, 63
        %v1832 = vpop.permute.xlu0 %1831
        %1833 = vrot.lane.b32.xlu0 %v1553, 63
        %v1834 = vpop.permute.xlu0 %1833
        %1835 = vrot.lane.b32.xlu0 %v1556, 63
        %v1836 = vpop.permute.xlu0 %1835
        %1845 = vst.msk [vmem:[%s487] sm:$0xff] %vm1262, %v1822
        %1846 = vst.msk [vmem:[%s487 + $0x8] sm:$0xff] %vm1262, %v1824
        %1847 = vst.msk [vmem:[%s487 + $0x10] sm:$0xff] %vm1262, %v1826
        %1848 = vst.msk [vmem:[%s487 + $0x18] sm:$0xff] %vm1262, %v1828
        %1849 = vst.msk [vmem:[%s487 + $0x20] sm:$0xff] %vm1262, %v1830
        %1850 = vst.msk [vmem:[%s487 + $0x28] sm:$0xff] %vm1262, %v1832
        %1851 = vst.msk [vmem:[%s487 + $0x30] sm:$0xff] %vm1262, %v1834
        %1852 = vst.msk [vmem:[%s487 + $0x38] sm:$0xff] %vm1262, %v1836
        %s1853 = sand.u32 %s194, 1
        %s1854 = scalar_lea.sflag [#allocation5], %s1853
        %s1855 = sand.u32 %s194, 1
        %s1856 = smul.addr %s1855, 32
        %s1857 = scalar_lea.vmem [#allocation11], %s1856
        %s1858 = sand.u32 %s220, 1
        %s1859 = scalar_lea.sflag [#allocation13], %s1858
        %s1860 = sand.u32 %s220, 1
        %s1861 = smul.addr %s1860, 64
        %s1862 = scalar_lea.vmem [#allocation12], %s1861
        %s1863 = smul.u32 8, %s34
        %p1864 = scmp.lt.s32.totalorder %s1863, 15
        %s1865 = scalar_select %p1864, %s1863, 15
        %s1866 = smul.addr %s1865, 8
        %s1867 = scalar_lea.vmem %s9, %s1866
        %p1868 = scmp.lt.s32.totalorder %s34, 1
        %s1869 = scalar_select %p1868, %s34, 1
        %s1870 = smul.addr %s1869, 7
        %s1871 = smul.addr %s1870, 8
        %s1872 = scalar_lea.vmem %s10, %s1871
        %p1873 = scmp.lt.s32.totalorder %s34, 1
        %s1874 = scalar_select %p1873, %s34, 1
        %s1875 = smul.addr %s1874, 8
        %s1876 = smul.addr %s1875, 8
        %s1877 = scalar_lea.vmem %s11, %s1876
        // Predicated region
        $region65: #{tpu_custom_call.1} parent=47 // pred_check
          %p1878 = pneg %p204
        $region66: #{tpu_custom_call.1} parent=47 // pred_check_branch
          %1880 = sbr.rel (%p1878) target = $region68
        $region67: #{tpu_custom_call.1} parent=47 // pred_region
          %s1881 = smul.u32 8, %s34
          %s1883 = ssub.s32 512, 512
          %1884 = vsyncadd %s1854, %s1883
          %s1885 = smul.addr %s1881, 64
          %s1886 = scalar_lea.hbm %s7, %s1885
          %s1887 = sshll.u32 %s1857, 4
          %s1888 = int_to_ptr.vmem [resolvable:$true] %s1887
          %1893 = dma.vmem_to_hbm [thread:$0]  %s1888, 512, %s1886, %s1854, 64, 64, 4
        $region68: #{tpu_custom_call.1} parent=47 // pred_fallthru
          _
        // Predicated region
        $region69: #{tpu_custom_call.1} parent=47 // pred_check
          %p1894 = pneg %p230
        $region70: #{tpu_custom_call.1} parent=47 // pred_check_branch
          %1896 = sbr.rel (%p1894) target = $region72
        $region71: #{tpu_custom_call.1} parent=47 // pred_region
          %s1897 = smul.u32 8, %s34
          %s1899 = ssub.s32 1024, 1024
          %1900 = vsyncadd %s1859, %s1899
          %s1901 = smul.addr %s1897, 128
          %s1902 = scalar_lea.hbm %s8, %s1901
          %s1903 = sshll.u32 %s1862, 4
          %s1904 = int_to_ptr.vmem [resolvable:$true] %s1903
          %1909 = dma.vmem_to_hbm [thread:$0]  %s1904, 1024, %s1902, %s1859, 128, 128, 8
        $region72: #{tpu_custom_call.1} parent=47 // pred_fallthru
          _
        // Predicated region
        $region73: #{tpu_custom_call.1} parent=47 // pred_check
          %p1910 = pneg %p256
        $region74: #{tpu_custom_call.1} parent=47 // pred_check_branch
          %1912 = sbr.rel (%p1910) target = $region76
        $region75: #{tpu_custom_call.1} parent=47 // pred_region
          %s1913 = smul.u32 8, %s34
        $region76: #{tpu_custom_call.1} parent=47 // pred_fallthru
          _
        // Predicated region
        $region77: #{tpu_custom_call.1} parent=47 // pred_check
          %p1914 = pneg %p282
        $region78: #{tpu_custom_call.1} parent=47 // pred_check_branch
          %1916 = sbr.rel (%p1914) target = $region80
        $region79: #{tpu_custom_call.1} parent=47 // pred_region
          _
        $region80: #{tpu_custom_call.1} parent=47 // pred_fallthru
          _
        // Predicated region
        $region81: #{tpu_custom_call.1} parent=47 // pred_check
          %p1917 = pneg %p308
        $region82: #{tpu_custom_call.1} parent=47 // pred_check_branch
          %1919 = sbr.rel (%p1917) target = $region84
        $region83: #{tpu_custom_call.1} parent=47 // pred_region
          _
        $region84: #{tpu_custom_call.1} parent=47 // pred_fallthru
          _
      $region48: #{tpu_custom_call.1} parent=5 // pred_fallthru
        _
      %p1920 = scmp.le.s32.totalorder 2, %s29
      // Predicated region
      $region85: #{tpu_custom_call.1} parent=5 // pred_check
        %p1921 = pneg %p1920
      $region86: #{tpu_custom_call.1} parent=5 // pred_check_branch
        %1923 = sbr.rel (%p1921) target = $region88
      $region87: #{tpu_custom_call.1} parent=5 // pred_region
        %s1924 = ssub.s32 %s29, 2
        // Predicated region
        $region89: #{tpu_custom_call.1} parent=87 // pred_check
          %p1925 = pneg %p210
        $region90: #{tpu_custom_call.1} parent=87 // pred_check_branch
          %1927 = sbr.rel (%p1925) target = $region92
        $region91: #{tpu_custom_call.1} parent=87 // pred_region
          %s1928 = sand.u32 %s195, 1
          %s1929 = scalar_lea.sflag [#allocation5], %s1928
          %s1930 = sand.u32 %s195, 1
          %s1931 = smul.addr %s1930, 32
          %s1932 = scalar_lea.vmem [#allocation11], %s1931
          %1933 = dma.done %s1929, 512
        $region92: #{tpu_custom_call.1} parent=87 // pred_fallthru
          _
        // Predicated region
        $region93: #{tpu_custom_call.1} parent=87 // pred_check
          %p1934 = pneg %p236
        $region94: #{tpu_custom_call.1} parent=87 // pred_check_branch
          %1936 = sbr.rel (%p1934) target = $region96
        $region95: #{tpu_custom_call.1} parent=87 // pred_region
          %s1937 = sand.u32 %s221, 1
          %s1938 = scalar_lea.sflag [#allocation13], %s1937
          %s1939 = sand.u32 %s221, 1
          %s1940 = smul.addr %s1939, 64
          %s1941 = scalar_lea.vmem [#allocation12], %s1940
          %1942 = dma.done %s1938, 1024
        $region96: #{tpu_custom_call.1} parent=87 // pred_fallthru
          _
        // Predicated region
        $region97: #{tpu_custom_call.1} parent=87 // pred_check
          %p1943 = pneg %p262
        $region98: #{tpu_custom_call.1} parent=87 // pred_check_branch
          %1945 = sbr.rel (%p1943) target = $region100
        $region99: #{tpu_custom_call.1} parent=87 // pred_region
          %s1946 = smul.u32 8, %s35
          %p1947 = scmp.lt.s32.totalorder %s1946, 15
          %s1948 = scalar_select %p1947, %s1946, 15
          %s1949 = smul.addr %s1948, 8
          %s1950 = scalar_lea.vmem %s9, %s1949
        $region100: #{tpu_custom_call.1} parent=87 // pred_fallthru
          _
        // Predicated region
        $region101: #{tpu_custom_call.1} parent=87 // pred_check
          %p1951 = pneg %p288
        $region102: #{tpu_custom_call.1} parent=87 // pred_check_branch
          %1953 = sbr.rel (%p1951) target = $region104
        $region103: #{tpu_custom_call.1} parent=87 // pred_region
          %p1954 = scmp.lt.s32.totalorder %s35, 1
          %s1955 = scalar_select %p1954, %s35, 1
          %s1956 = smul.addr %s1955, 7
          %s1957 = smul.addr %s1956, 8
          %s1958 = scalar_lea.vmem %s10, %s1957
        $region104: #{tpu_custom_call.1} parent=87 // pred_fallthru
          _
        // Predicated region
        $region105: #{tpu_custom_call.1} parent=87 // pred_check
          %p1959 = pneg %p314
        $region106: #{tpu_custom_call.1} parent=87 // pred_check_branch
          %1961 = sbr.rel (%p1959) target = $region108
        $region107: #{tpu_custom_call.1} parent=87 // pred_region
          %p1962 = scmp.lt.s32.totalorder %s35, 1
          %s1963 = scalar_select %p1962, %s35, 1
          %s1964 = smul.addr %s1963, 8
          %s1965 = smul.addr %s1964, 8
          %s1966 = scalar_lea.vmem %s11, %s1965
        $region108: #{tpu_custom_call.1} parent=87 // pred_fallthru
          _
      $region88: #{tpu_custom_call.1} parent=5 // pred_fallthru
        _
    $region6: #{tpu_custom_call.1} parent=1 // loop_footer
      %s33 = sadd.s32 1, %s29
    $region7: #{tpu_custom_call.1} parent=1 // loop_footer_branch
      %28 = sbr.rel target = $region3
    $region8: #{tpu_custom_call.1} parent=1 // loop_exit
      _
    %1967 = vsyncpa [#allocation4], 1
    %s1968 = scalar_lea.sflag [#allocation4], 1
    %1969 = vsyncpa %s1968, 1
    %1970 = vsyncpa [#allocation7], 1
    %1971 = vsyncpa [#allocation10], 1
    %1972 = vsyncpa [#allocation5], 1
    %s1973 = scalar_lea.sflag [#allocation5], 1
    %1974 = vsyncpa %s1973, 1
    %1975 = vsyncpa [#allocation13], 1
    %s1976 = scalar_lea.sflag [#allocation13], 1
    %1977 = vsyncpa %s1976, 1

</llo_original>
